<compile_context>
chip_gen: v5e
topology: v5e:2x2
jax: 0.10.0
libtpu: 0.0.40
codegen_flags: <defaults>
</compile_context>

<pallas_src>
import jax
import jax.numpy as jnp
from jax.experimental import pallas as pl
from jax.experimental.pallas import tpu as pltpu


def _make_res_block_kernel(N, H, W, C, eps=1e-5, out_dtype=jnp.float32):
    """Builds a pallas_call for res_block at static shape (N, H, W, C)."""
    HW = H * W
    R = N * C                      # stacked rows, n-major: row = n*C + c
    taps = [(dy, dx) for dy in (-1, 0, 1) for dx in (-1, 0, 1)]
    inv_cnt = 1.0 / float(N * HW)  # BN normalizes over (N, H, W) per channel

    def kernel(x_ref, w_ref, g_ref, b_ref, o_ref):
        # x_ref / o_ref : VMEM (R, HW)   -- lane-dense activation slab (free
        #                                   reshape of NCHW, row = n*C + c)
        # w_ref         : VMEM (R, 9*R)  -- block-diagonal channel-mix weights
        # g_ref / b_ref : VMEM (R, 1)    -- per-row BN gamma / beta columns
        x = x_ref[...].astype(jnp.float32)
        wm = w_ref[...]
        gamma_col = g_ref[...]
        beta_col = b_ref[...]

        # ---- 3x3 zero-padding masks: built once, shared by both convs ----
        col = jax.lax.broadcasted_iota(jnp.int32, (R, HW), 1)
        if (W & (W - 1)) == 0:                         # power-of-two fast path
            yy = col >> (W.bit_length() - 1)
            xx = col & (W - 1)
        else:
            yy = col // W
            xx = col - yy * W
        masks = []
        for dy, dx in taps:
            conds = []
            if dy == -1:
                conds.append(yy >= 1)
            elif dy == 1:
                conds.append(yy < H - 1)
            if dx == -1:
                conds.append(xx >= 1)
            elif dx == 1:
                conds.append(xx < W - 1)
            m = None
            for cnd in conds:
                m = cnd if m is None else (m & cnd)
            masks.append(m)                            # None for the center tap

        def conv_bn_relu(h):
            # One lane roll + one select per tap on the full dense slab
            # (channel/batch independent -> hoisted out of all channel loops).
            # Circular roll + boundary mask == exact Conv2d zero padding.
            shifted = []
            for t, (dy, dx) in enumerate(taps):
                off = dy * W + dx                      # flat offset of source pixel
                s = h
                if off:
                    s = pltpu.roll(s, (-off) % HW, axis=1)     # XLU lane rotate
                if masks[t] is not None:
                    s = jnp.where(masks[t], s, 0.0)
                shifted.append(s)
            patches = jnp.concatenate(shifted, axis=0)         # (9*R, HW)

            # Channel mix on the MXU: (R, 9R) x (9R, HW) -> (R, HW).
            # Output lanes stay fully dense (HW = 256); no im2col transpose.
            a = jnp.dot(wm, patches,
                        preferred_element_type=jnp.float32,
                        precision=jax.lax.Precision.HIGHEST)

            # Train-mode BatchNorm, all channels at once (two-pass):
            # lane reduction per row, tiny sublane roll to combine the N rows
            # belonging to the same channel, then per-row scale/shift columns.
            row_s = jnp.sum(a, axis=1, keepdims=True)          # (R, 1)
            chan_s = row_s
            for k in range(1, N):
                chan_s = chan_s + pltpu.roll(row_s, k * C, axis=0)
            mean = chan_s * inv_cnt                            # (R, 1)
            cen = a - mean                                     # lane broadcast
            row_v = jnp.sum(cen * cen, axis=1, keepdims=True)  # (R, 1)
            chan_v = row_v
            for k in range(1, N):
                chan_v = chan_v + pltpu.roll(row_v, k * C, axis=0)
            var = chan_v * inv_cnt                             # biased variance
            scale = jax.lax.rsqrt(var + eps) * gamma_col
            return jnp.maximum(cen * scale + beta_col, 0.0)

        h = conv_bn_relu(x)            # first conv/BN/ReLU   (shared weights)
        h = conv_bn_relu(h)            # second conv/BN/ReLU  (same modules)
        # Residual add + ReLU, one full-width lane-dense store.
        o_ref[...] = jnp.maximum(h + x, 0.0).astype(o_ref.dtype)

    return pl.pallas_call(
        kernel,
        out_shape=jax.ShapeDtypeStruct((R, HW), out_dtype),
        in_specs=[
            pl.BlockSpec(memory_space=pltpu.MemorySpace.VMEM),   # x   (R, HW)
            pl.BlockSpec(memory_space=pltpu.MemorySpace.VMEM),   # Wm  (R, 9R)
            pl.BlockSpec(memory_space=pltpu.MemorySpace.VMEM),   # gamma (R, 1)
            pl.BlockSpec(memory_space=pltpu.MemorySpace.VMEM),   # beta  (R, 1)
        ],
        out_specs=pl.BlockSpec(memory_space=pltpu.MemorySpace.VMEM),
    )


def res_block_forward(x_nchw, w_hwio, bias, gamma, beta):
    """res_block forward.  x_nchw: (N, C, H, W) like PyTorch; returns same.

    `bias` (the Conv2d bias) is accepted for interface parity but not used:
    a per-channel constant added immediately before a train-mode BatchNorm is
    exactly cancelled by the mean subtraction (the reference keeps the bias).
    """
    del bias
    N, C, H, W = x_nchw.shape
    R, HW = N * C, H * W

    # Free reshape of NCHW -- no transpose, no extra HBM round trip.
    x2d = x_nchw.reshape(R, HW).astype(jnp.float32)

    # Parameter-only prep (tiny): per-batch block-diagonal channel-mix matrix
    #   wm[n*C + co, t*R + n'*C + ci] = w[t, ci, co] * (n == n')
    w9 = w_hwio.astype(jnp.float32).reshape(9, C, C)          # [tap, ci, co]
    eye_n = jnp.eye(N, dtype=jnp.float32)
    wm = jnp.concatenate([jnp.kron(eye_n, w9[t].T) for t in range(9)], axis=1)

    # Per-row (n-major) BN affine columns: gamma_col[n*C + c] = gamma[c].
    gamma_col = jnp.tile(gamma.astype(jnp.float32), (N,)).reshape(R, 1)
    beta_col = jnp.tile(beta.astype(jnp.float32), (N,)).reshape(R, 1)

    fn = _make_res_block_kernel(N, H, W, C, out_dtype=x_nchw.dtype)
    out2d = fn(x2d, wm, gamma_col, beta_col)
    return out2d.reshape(N, C, H, W)                          # free reshape back


# ---------------- pure-JAX reference for verification ----------------
def _reference(x_nchw, w_hwio, bias, gamma, beta, eps=1e-5):
    x = jnp.transpose(x_nchw, (0, 2, 3, 1)).astype(jnp.float32)

    def conv_bn_relu(h):
        c = jax.lax.conv_general_dilated(
            h, w_hwio.astype(jnp.float32),
            window_strides=(1, 1), padding="SAME",
            dimension_numbers=("NHWC", "HWIO", "NHWC"),
        ) + bias
        mean = jnp.mean(c, axis=(0, 1, 2), keepdims=True)
        var = jnp.mean((c - mean) ** 2, axis=(0, 1, 2), keepdims=True)
        y = (c - mean) * jax.lax.rsqrt(var + eps) * gamma + beta
        return jnp.maximum(y, 0.0)

    h = conv_bn_relu(x)
    h = conv_bn_relu(h)
    out = jnp.maximum(h + x, 0.0)
    return jnp.transpose(out, (0, 3, 1, 2))


if __name__ == "__main__":
    N, C, H, W = 2, 4, 16, 16

    key = jax.random.PRNGKey(0)
    kx, kw, kb, kg, kbt = jax.random.split(key, 5)

    x = jax.random.normal(kx, (N, C, H, W), dtype=jnp.float32)
    # conv3x3 weight (HWIO) + bias, deterministic init
    fan_in = C * 3 * 3
    bound = 1.0 / (fan_in ** 0.5)
    w_hwio = jax.random.uniform(kw, (3, 3, C, C), jnp.float32, -bound, bound)
    bias = jax.random.uniform(kb, (C,), jnp.float32, -bound, bound)
    # BatchNorm affine params (PyTorch default gamma=1, beta=0; perturbed here
    # to exercise the scale/shift path)
    gamma = 1.0 + 0.1 * jax.random.normal(kg, (C,), jnp.float32)
    beta = 0.1 * jax.random.normal(kbt, (C,), jnp.float32)

    out = res_block_forward(x, w_hwio, bias, gamma, beta)
    out = jax.block_until_ready(out)

    ref = _reference(x, w_hwio, bias, gamma, beta)
    assert out.shape == (N, C, H, W)
    assert jnp.allclose(out, ref, atol=1e-4, rtol=1e-4), float(
        jnp.max(jnp.abs(out - ref))
    )
    print("KERNEL_OK")
</pallas_src>

<mosaic_0001>
module attributes {stable_mosaic.version = 11 : i64} {
  func.func @kernel(%arg0: memref<8x256xf32, #tpu.memory_space<vmem>>, %arg1: memref<8x72xf32, #tpu.memory_space<vmem>>, %arg2: memref<8x1xf32, #tpu.memory_space<vmem>>, %arg3: memref<8x1xf32, #tpu.memory_space<vmem>>, %arg4: memref<8x256xf32, #tpu.memory_space<vmem>>) attributes {dimension_semantics = [], scalar_prefetch = 0 : i64, scratch_operands = 0 : i64, tpu.core_type = #tpu.core_type<tc>} {
    %c0 = arith.constant 0 : index
    %c0_0 = arith.constant 0 : index
    %0 = vector.load %arg0[%c0, %c0_0] : memref<8x256xf32, #tpu.memory_space<vmem>>, vector<8x256xf32>
    %c0_1 = arith.constant 0 : index
    %c0_2 = arith.constant 0 : index
    %1 = vector.load %arg1[%c0_1, %c0_2] : memref<8x72xf32, #tpu.memory_space<vmem>>, vector<8x72xf32>
    %c0_3 = arith.constant 0 : index
    %c0_4 = arith.constant 0 : index
    %2 = vector.load %arg2[%c0_3, %c0_4] : memref<8x1xf32, #tpu.memory_space<vmem>>, vector<8x1xf32>
    %c0_5 = arith.constant 0 : index
    %c0_6 = arith.constant 0 : index
    %3 = vector.load %arg3[%c0_5, %c0_6] : memref<8x1xf32, #tpu.memory_space<vmem>>, vector<8x1xf32>
    %4 = tpu.iota {dimensions = array<i32: 1>} : vector<8x256xi32>
    %c4_i32 = arith.constant 4 : i32
    %5 = vector.broadcast %c4_i32 : i32 to vector<8x256xi32>
    %6 = arith.shrsi %4, %5 : vector<8x256xi32>
    %c15_i32 = arith.constant 15 : i32
    %7 = vector.broadcast %c15_i32 : i32 to vector<8x256xi32>
    %8 = arith.andi %4, %7 : vector<8x256xi32>
    %c1_i32 = arith.constant 1 : i32
    %9 = vector.broadcast %c1_i32 : i32 to vector<8x256xi32>
    %10 = arith.cmpi sge, %6, %9 : vector<8x256xi32>
    %c1_i32_7 = arith.constant 1 : i32
    %11 = vector.broadcast %c1_i32_7 : i32 to vector<8x256xi32>
    %12 = arith.cmpi sge, %8, %11 : vector<8x256xi32>
    %13 = arith.andi %10, %12 : vector<8x256xi1>
    %c1_i32_8 = arith.constant 1 : i32
    %14 = vector.broadcast %c1_i32_8 : i32 to vector<8x256xi32>
    %15 = arith.cmpi sge, %6, %14 : vector<8x256xi32>
    %c1_i32_9 = arith.constant 1 : i32
    %16 = vector.broadcast %c1_i32_9 : i32 to vector<8x256xi32>
    %17 = arith.cmpi sge, %6, %16 : vector<8x256xi32>
    %c15_i32_10 = arith.constant 15 : i32
    %18 = vector.broadcast %c15_i32_10 : i32 to vector<8x256xi32>
    %19 = arith.cmpi slt, %8, %18 : vector<8x256xi32>
    %20 = arith.andi %17, %19 : vector<8x256xi1>
    %c1_i32_11 = arith.constant 1 : i32
    %21 = vector.broadcast %c1_i32_11 : i32 to vector<8x256xi32>
    %22 = arith.cmpi sge, %8, %21 : vector<8x256xi32>
    %c15_i32_12 = arith.constant 15 : i32
    %23 = vector.broadcast %c15_i32_12 : i32 to vector<8x256xi32>
    %24 = arith.cmpi slt, %8, %23 : vector<8x256xi32>
    %c15_i32_13 = arith.constant 15 : i32
    %25 = vector.broadcast %c15_i32_13 : i32 to vector<8x256xi32>
    %26 = arith.cmpi slt, %6, %25 : vector<8x256xi32>
    %c1_i32_14 = arith.constant 1 : i32
    %27 = vector.broadcast %c1_i32_14 : i32 to vector<8x256xi32>
    %28 = arith.cmpi sge, %8, %27 : vector<8x256xi32>
    %29 = arith.andi %26, %28 : vector<8x256xi1>
    %c15_i32_15 = arith.constant 15 : i32
    %30 = vector.broadcast %c15_i32_15 : i32 to vector<8x256xi32>
    %31 = arith.cmpi slt, %6, %30 : vector<8x256xi32>
    %c15_i32_16 = arith.constant 15 : i32
    %32 = vector.broadcast %c15_i32_16 : i32 to vector<8x256xi32>
    %33 = arith.cmpi slt, %6, %32 : vector<8x256xi32>
    %c15_i32_17 = arith.constant 15 : i32
    %34 = vector.broadcast %c15_i32_17 : i32 to vector<8x256xi32>
    %35 = arith.cmpi slt, %8, %34 : vector<8x256xi32>
    %36 = arith.andi %33, %35 : vector<8x256xi1>
    %c17_i32 = arith.constant 17 : i32
    %37 = tpu.dynamic_rotate %0 by %c17_i32 dim 1 : vector<8x256xf32>, i32 -> vector<8x256xf32>
    %cst = arith.constant 0.000000e+00 : f32
    %38 = vector.broadcast %cst : f32 to vector<8x256xf32>
    %39 = arith.select %13, %37, %38 : vector<8x256xi1>, vector<8x256xf32>
    %c16_i32 = arith.constant 16 : i32
    %40 = tpu.dynamic_rotate %0 by %c16_i32 dim 1 : vector<8x256xf32>, i32 -> vector<8x256xf32>
    %cst_18 = arith.constant 0.000000e+00 : f32
    %41 = vector.broadcast %cst_18 : f32 to vector<8x256xf32>
    %42 = arith.select %15, %40, %41 : vector<8x256xi1>, vector<8x256xf32>
    %c15_i32_19 = arith.constant 15 : i32
    %43 = tpu.dynamic_rotate %0 by %c15_i32_19 dim 1 : vector<8x256xf32>, i32 -> vector<8x256xf32>
    %cst_20 = arith.constant 0.000000e+00 : f32
    %44 = vector.broadcast %cst_20 : f32 to vector<8x256xf32>
    %45 = arith.select %20, %43, %44 : vector<8x256xi1>, vector<8x256xf32>
    %c1_i32_21 = arith.constant 1 : i32
    %46 = tpu.dynamic_rotate %0 by %c1_i32_21 dim 1 : vector<8x256xf32>, i32 -> vector<8x256xf32>
    %cst_22 = arith.constant 0.000000e+00 : f32
    %47 = vector.broadcast %cst_22 : f32 to vector<8x256xf32>
    %48 = arith.select %22, %46, %47 : vector<8x256xi1>, vector<8x256xf32>
    %c255_i32 = arith.constant 255 : i32
    %49 = tpu.dynamic_rotate %0 by %c255_i32 dim 1 : vector<8x256xf32>, i32 -> vector<8x256xf32>
    %cst_23 = arith.constant 0.000000e+00 : f32
    %50 = vector.broadcast %cst_23 : f32 to vector<8x256xf32>
    %51 = arith.select %24, %49, %50 : vector<8x256xi1>, vector<8x256xf32>
    %c241_i32 = arith.constant 241 : i32
    %52 = tpu.dynamic_rotate %0 by %c241_i32 dim 1 : vector<8x256xf32>, i32 -> vector<8x256xf32>
    %cst_24 = arith.constant 0.000000e+00 : f32
    %53 = vector.broadcast %cst_24 : f32 to vector<8x256xf32>
    %54 = arith.select %29, %52, %53 : vector<8x256xi1>, vector<8x256xf32>
    %c240_i32 = arith.constant 240 : i32
    %55 = tpu.dynamic_rotate %0 by %c240_i32 dim 1 : vector<8x256xf32>, i32 -> vector<8x256xf32>
    %cst_25 = arith.constant 0.000000e+00 : f32
    %56 = vector.broadcast %cst_25 : f32 to vector<8x256xf32>
    %57 = arith.select %31, %55, %56 : vector<8x256xi1>, vector<8x256xf32>
    %c239_i32 = arith.constant 239 : i32
    %58 = tpu.dynamic_rotate %0 by %c239_i32 dim 1 : vector<8x256xf32>, i32 -> vector<8x256xf32>
    %cst_26 = arith.constant 0.000000e+00 : f32
    %59 = vector.broadcast %cst_26 : f32 to vector<8x256xf32>
    %60 = arith.select %36, %58, %59 : vector<8x256xi1>, vector<8x256xf32>
    %61 = tpu.concatenate %39, %42, %45, %48, %0, %51, %54, %57, %60 in 0 : vector<8x256xf32>, vector<8x256xf32>, vector<8x256xf32>, vector<8x256xf32>, vector<8x256xf32>, vector<8x256xf32>, vector<8x256xf32>, vector<8x256xf32>, vector<8x256xf32> -> vector<72x256xf32>
    %cst_27 = arith.constant dense<0.000000e+00> : vector<8x256xf32>
    %62 = tpu.matmul %1, %61, %cst_27 {dimension_numbers = #tpu.dot_dimension_numbers<[1], [0], [0], [1], [0, 0, 1, 1], [], []>, precision = #tpu.contract_precision<fp32>} : vector<8x72xf32>, vector<72x256xf32>, vector<8x256xf32> -> vector<8x256xf32>
    %cst_28 = arith.constant dense<0.000000e+00> : vector<8xf32>
    %63 = vector.multi_reduction <add>, %62, %cst_28 [1] : vector<8x256xf32> to vector<8xf32>
    %64 = vector.shape_cast %63 : vector<8xf32> to vector<8x1xf32>
    %c4_i32_29 = arith.constant 4 : i32
    %65 = tpu.dynamic_rotate %64 by %c4_i32_29 dim 0 : vector<8x1xf32>, i32 -> vector<8x1xf32>
    %66 = arith.addf %64, %65 : vector<8x1xf32>
    %cst_30 = arith.constant 0.001953125 : f32
    %67 = vector.broadcast %cst_30 : f32 to vector<8x1xf32>
    %68 = arith.mulf %66, %67 : vector<8x1xf32>
    %69 = vector.broadcast %68 : vector<8x1xf32> to vector<8x256xf32>
    %70 = arith.subf %62, %69 : vector<8x256xf32>
    %71 = arith.mulf %70, %70 : vector<8x256xf32>
    %cst_31 = arith.constant dense<0.000000e+00> : vector<8xf32>
    %72 = vector.multi_reduction <add>, %71, %cst_31 [1] : vector<8x256xf32> to vector<8xf32>
    %73 = vector.shape_cast %72 : vector<8xf32> to vector<8x1xf32>
    %c4_i32_32 = arith.constant 4 : i32
    %74 = tpu.dynamic_rotate %73 by %c4_i32_32 dim 0 : vector<8x1xf32>, i32 -> vector<8x1xf32>
    %75 = arith.addf %73, %74 : vector<8x1xf32>
    %cst_33 = arith.constant 0.001953125 : f32
    %76 = vector.broadcast %cst_33 : f32 to vector<8x1xf32>
    %77 = arith.mulf %75, %76 : vector<8x1xf32>
    %cst_34 = arith.constant 9.99999974E-6 : f32
    %78 = vector.broadcast %cst_34 : f32 to vector<8x1xf32>
    %79 = arith.addf %77, %78 : vector<8x1xf32>
    %80 = math.rsqrt %79 : vector<8x1xf32>
    %81 = arith.mulf %80, %2 : vector<8x1xf32>
    %82 = vector.broadcast %81 : vector<8x1xf32> to vector<8x256xf32>
    %83 = arith.mulf %70, %82 : vector<8x256xf32>
    %84 = vector.broadcast %3 : vector<8x1xf32> to vector<8x256xf32>
    %85 = arith.addf %83, %84 : vector<8x256xf32>
    %cst_35 = arith.constant 0.000000e+00 : f32
    %86 = vector.broadcast %cst_35 : f32 to vector<8x256xf32>
    %87 = arith.maximumf %85, %86 : vector<8x256xf32>
    %c17_i32_36 = arith.constant 17 : i32
    %88 = tpu.dynamic_rotate %87 by %c17_i32_36 dim 1 : vector<8x256xf32>, i32 -> vector<8x256xf32>
    %cst_37 = arith.constant 0.000000e+00 : f32
    %89 = vector.broadcast %cst_37 : f32 to vector<8x256xf32>
    %90 = arith.select %13, %88, %89 : vector<8x256xi1>, vector<8x256xf32>
    %c16_i32_38 = arith.constant 16 : i32
    %91 = tpu.dynamic_rotate %87 by %c16_i32_38 dim 1 : vector<8x256xf32>, i32 -> vector<8x256xf32>
    %cst_39 = arith.constant 0.000000e+00 : f32
    %92 = vector.broadcast %cst_39 : f32 to vector<8x256xf32>
    %93 = arith.select %15, %91, %92 : vector<8x256xi1>, vector<8x256xf32>
    %c15_i32_40 = arith.constant 15 : i32
    %94 = tpu.dynamic_rotate %87 by %c15_i32_40 dim 1 : vector<8x256xf32>, i32 -> vector<8x256xf32>
    %cst_41 = arith.constant 0.000000e+00 : f32
    %95 = vector.broadcast %cst_41 : f32 to vector<8x256xf32>
    %96 = arith.select %20, %94, %95 : vector<8x256xi1>, vector<8x256xf32>
    %c1_i32_42 = arith.constant 1 : i32
    %97 = tpu.dynamic_rotate %87 by %c1_i32_42 dim 1 : vector<8x256xf32>, i32 -> vector<8x256xf32>
    %cst_43 = arith.constant 0.000000e+00 : f32
    %98 = vector.broadcast %cst_43 : f32 to vector<8x256xf32>
    %99 = arith.select %22, %97, %98 : vector<8x256xi1>, vector<8x256xf32>
    %c255_i32_44 = arith.constant 255 : i32
    %100 = tpu.dynamic_rotate %87 by %c255_i32_44 dim 1 : vector<8x256xf32>, i32 -> vector<8x256xf32>
    %cst_45 = arith.constant 0.000000e+00 : f32
    %101 = vector.broadcast %cst_45 : f32 to vector<8x256xf32>
    %102 = arith.select %24, %100, %101 : vector<8x256xi1>, vector<8x256xf32>
    %c241_i32_46 = arith.constant 241 : i32
    %103 = tpu.dynamic_rotate %87 by %c241_i32_46 dim 1 : vector<8x256xf32>, i32 -> vector<8x256xf32>
    %cst_47 = arith.constant 0.000000e+00 : f32
    %104 = vector.broadcast %cst_47 : f32 to vector<8x256xf32>
    %105 = arith.select %29, %103, %104 : vector<8x256xi1>, vector<8x256xf32>
    %c240_i32_48 = arith.constant 240 : i32
    %106 = tpu.dynamic_rotate %87 by %c240_i32_48 dim 1 : vector<8x256xf32>, i32 -> vector<8x256xf32>
    %cst_49 = arith.constant 0.000000e+00 : f32
    %107 = vector.broadcast %cst_49 : f32 to vector<8x256xf32>
    %108 = arith.select %31, %106, %107 : vector<8x256xi1>, vector<8x256xf32>
    %c239_i32_50 = arith.constant 239 : i32
    %109 = tpu.dynamic_rotate %87 by %c239_i32_50 dim 1 : vector<8x256xf32>, i32 -> vector<8x256xf32>
    %cst_51 = arith.constant 0.000000e+00 : f32
    %110 = vector.broadcast %cst_51 : f32 to vector<8x256xf32>
    %111 = arith.select %36, %109, %110 : vector<8x256xi1>, vector<8x256xf32>
    %112 = tpu.concatenate %90, %93, %96, %99, %87, %102, %105, %108, %111 in 0 : vector<8x256xf32>, vector<8x256xf32>, vector<8x256xf32>, vector<8x256xf32>, vector<8x256xf32>, vector<8x256xf32>, vector<8x256xf32>, vector<8x256xf32>, vector<8x256xf32> -> vector<72x256xf32>
    %cst_52 = arith.constant dense<0.000000e+00> : vector<8x256xf32>
    %113 = tpu.matmul %1, %112, %cst_52 {dimension_numbers = #tpu.dot_dimension_numbers<[1], [0], [0], [1], [0, 0, 1, 1], [], []>, precision = #tpu.contract_precision<fp32>} : vector<8x72xf32>, vector<72x256xf32>, vector<8x256xf32> -> vector<8x256xf32>
    %cst_53 = arith.constant dense<0.000000e+00> : vector<8xf32>
    %114 = vector.multi_reduction <add>, %113, %cst_53 [1] : vector<8x256xf32> to vector<8xf32>
    %115 = vector.shape_cast %114 : vector<8xf32> to vector<8x1xf32>
    %c4_i32_54 = arith.constant 4 : i32
    %116 = tpu.dynamic_rotate %115 by %c4_i32_54 dim 0 : vector<8x1xf32>, i32 -> vector<8x1xf32>
    %117 = arith.addf %115, %116 : vector<8x1xf32>
    %cst_55 = arith.constant 0.001953125 : f32
    %118 = vector.broadcast %cst_55 : f32 to vector<8x1xf32>
    %119 = arith.mulf %117, %118 : vector<8x1xf32>
    %120 = vector.broadcast %119 : vector<8x1xf32> to vector<8x256xf32>
    %121 = arith.subf %113, %120 : vector<8x256xf32>
    %122 = arith.mulf %121, %121 : vector<8x256xf32>
    %cst_56 = arith.constant dense<0.000000e+00> : vector<8xf32>
    %123 = vector.multi_reduction <add>, %122, %cst_56 [1] : vector<8x256xf32> to vector<8xf32>
    %124 = vector.shape_cast %123 : vector<8xf32> to vector<8x1xf32>
    %c4_i32_57 = arith.constant 4 : i32
    %125 = tpu.dynamic_rotate %124 by %c4_i32_57 dim 0 : vector<8x1xf32>, i32 -> vector<8x1xf32>
    %126 = arith.addf %124, %125 : vector<8x1xf32>
    %cst_58 = arith.constant 0.001953125 : f32
    %127 = vector.broadcast %cst_58 : f32 to vector<8x1xf32>
    %128 = arith.mulf %126, %127 : vector<8x1xf32>
    %cst_59 = arith.constant 9.99999974E-6 : f32
    %129 = vector.broadcast %cst_59 : f32 to vector<8x1xf32>
    %130 = arith.addf %128, %129 : vector<8x1xf32>
    %131 = math.rsqrt %130 : vector<8x1xf32>
    %132 = arith.mulf %131, %2 : vector<8x1xf32>
    %133 = vector.broadcast %132 : vector<8x1xf32> to vector<8x256xf32>
    %134 = arith.mulf %121, %133 : vector<8x256xf32>
    %135 = vector.broadcast %3 : vector<8x1xf32> to vector<8x256xf32>
    %136 = arith.addf %134, %135 : vector<8x256xf32>
    %cst_60 = arith.constant 0.000000e+00 : f32
    %137 = vector.broadcast %cst_60 : f32 to vector<8x256xf32>
    %138 = arith.maximumf %136, %137 : vector<8x256xf32>
    %139 = arith.addf %138, %0 : vector<8x256xf32>
    %cst_61 = arith.constant 0.000000e+00 : f32
    %140 = vector.broadcast %cst_61 : f32 to vector<8x256xf32>
    %141 = arith.maximumf %139, %140 : vector<8x256xf32>
    %c0_62 = arith.constant 0 : index
    %c0_63 = arith.constant 0 : index
    %142 = vector.load %arg4[%c0_62, %c0_63] : memref<8x256xf32, #tpu.memory_space<vmem>>, vector<8x256xf32>
    tpu.vector_store %arg4[%c0_62, %c0_63], %141 {strides = array<i32>} : memref<8x256xf32, #tpu.memory_space<vmem>>, vector<8x256xf32>,
    return
  }
}

</mosaic_0001>

<llo_original>
// kernel: tpu_custom_call.1
$region0: #{tpu_custom_call.1}
  #allocation0 [shape = 'u32[]', space=smem, size = 0x4, offset = 0x4, fixed_abs, tag = 'smem constant byte address 0x4 - core index']
  #allocation1 [shape = 'u32[72,128]{1,0:T(1,128)}', space=vmem, size = 0x9000, scoped, tag = 'internal scratch']
  %s0 = inlined_call_operand.vmem [shape: f32[8,256], index: 0, kind: input, shape index: {}]
  %s1 = inlined_call_operand.hbm [shape: f32[8,72], index: 1, kind: input, shape index: {}]
  %s2 = inlined_call_operand.vmem [shape: f32[8,1], index: 2, kind: input, shape index: {}]
  %s3 = inlined_call_operand.vmem [shape: f32[8,1], index: 3, kind: input, shape index: {}]
  %s4 = inlined_call_operand.hbm [shape: f32[8,256], index: 4, kind: output, shape index: {}]
  %s5 = sld [smem:[#allocation0]]
  $region30: #{tpu_custom_call.1} parent=0
    _
  %s7 = ssub.s32 1, %s5
  %s8 = scalar_select 0, %s7, %s5
  $region1: #{tpu_custom_call.1} parent=0
    #allocation2 [shape = 'u8[4096]{0}', space=vmem, size = 0x1000, scoped, tag = 'input window, operand 1, single buffered']
    #allocation3 [shape = 's32[1]{0}', space=sflag, size = 0x4, scoped, tag = 'scoped memory for tpu_custom_call.1']
    #allocation4 [shape = 's32[1]{0}', space=sflag, size = 0x4, scoped, tag = 'scoped memory for tpu_custom_call.1']
    #allocation5 [shape = 'u8[8192]{0}', space=vmem, size = 0x2000, scoped, tag = 'output window, operand 0, single buffered']
    %9 = vsyncpa [#allocation3], 0
    %10 = vsyncpa [#allocation4], 0
    // Predicated region
    $region2: #{tpu_custom_call.1} parent=1 // pred_check
      _
    $region3: #{tpu_custom_call.1} parent=1 // pred_check_branch
      %12 = sbr.rel (0) target = $region5
    $region4: #{tpu_custom_call.1} parent=1 // pred_region
      _
    $region5: #{tpu_custom_call.1} parent=1 // pred_fallthru
      _
    // Predicated region
    $region6: #{tpu_custom_call.1} parent=1 // pred_check
      _
    $region7: #{tpu_custom_call.1} parent=1 // pred_check_branch
      %14 = sbr.rel (0) target = $region9
    $region8: #{tpu_custom_call.1} parent=1 // pred_region
      %16 = vsyncadd [#allocation3], 0
      %s18 = sshll.u32 %s1, 4
      %s19 = int_to_ptr.hbm [resolvable:$true] %s18
      %s20 = sshll.u32 [#allocation2], 4
      %s21 = int_to_ptr.vmem [resolvable:$true] %s20
      %23 = dma.hbm_to_vmem [thread:$0]  %s19, 128, %s21, [#allocation3]
    $region9: #{tpu_custom_call.1} parent=1 // pred_fallthru
      _
    // Predicated region
    $region10: #{tpu_custom_call.1} parent=1 // pred_check
      _
    $region11: #{tpu_custom_call.1} parent=1 // pred_check_branch
      %25 = sbr.rel (0) target = $region13
    $region12: #{tpu_custom_call.1} parent=1 // pred_region
      _
    $region13: #{tpu_custom_call.1} parent=1 // pred_fallthru
      _
    // Predicated region
    $region14: #{tpu_custom_call.1} parent=1 // pred_check
      _
    $region15: #{tpu_custom_call.1} parent=1 // pred_check_branch
      %27 = sbr.rel (0) target = $region17
    $region16: #{tpu_custom_call.1} parent=1 // pred_region
      _
    $region17: #{tpu_custom_call.1} parent=1 // pred_fallthru
      _
    // Predicated region
    $region18: #{tpu_custom_call.1} parent=1 // pred_check
      _
    $region19: #{tpu_custom_call.1} parent=1 // pred_check_branch
      %29 = sbr.rel (0) target = $region21
    $region20: #{tpu_custom_call.1} parent=1 // pred_region
      %31 = dma.done [#allocation3], 128
    $region21: #{tpu_custom_call.1} parent=1 // pred_fallthru
      _
    %v32 = vld [vmem:[%s0] sm:$0xff]
    %v33 = vld [vmem:[%s0 + $0x8] sm:$0xff]
    %v34 = vld [vmem:[#allocation2] sm:$0xff]
    %v35 = vld [vmem:[%s2] sm:$0xff]
    %v36 = vld [vmem:[%s3] sm:$0xff]
    %v37 = vlaneseq
    %v38 = vand.u32 %v37, 127
    %v39 = vadd.s32 %v38, 128
    %v40 = vshra.s32 %v38, 4
    %v41 = vshra.s32 %v39, 4
    %v42 = vand.u32 %v38, 15
    %v43 = vand.u32 %v39, 15
    %vm44 = vcmp.ge.s32.totalorder %v40, 1
    %vm45 = vcmp.ge.s32.totalorder %v41, 1
    %vm46 = vcmp.ge.s32.totalorder %v42, 1
    %vm47 = vcmp.ge.s32.totalorder %v43, 1
    %vm48 = vmand %vm44, %vm46
    %vm49 = vmand %vm45, %vm47
    %vm50 = vcmp.lt.s32.totalorder %v42, 15
    %vm51 = vcmp.lt.s32.totalorder %v43, 15
    %vm52 = vmand %vm44, %vm50
    %vm53 = vmand %vm45, %vm51
    %vm54 = vcmp.lt.s32.totalorder %v40, 15
    %vm55 = vcmp.lt.s32.totalorder %v41, 15
    %vm56 = vmand %vm54, %vm46
    %vm57 = vmand %vm55, %vm47
    %vm58 = vmand %vm54, %vm50
    %vm59 = vmand %vm55, %vm51
    %60 = vrot.lane.b32.xlu0 %v32, 17
    %v61 = vpop.permute.xlu0 %60
    %62 = vrot.lane.b32.xlu0 %v33, 17
    %v63 = vpop.permute.xlu0 %62
    %vm64 = vcmp.lt.s32.totalorder %v38, 17
    %v65 = vsel %vm64, %v61, %v63
    %v66 = vsel %vm64, %v63, %v61
    %v67 = vsel %vm48, %v66, 0.0
    %v68 = vsel %vm49, %v65, 0.0
    %69 = vrot.lane.b32.xlu0 %v32, 16
    %v70 = vpop.permute.xlu0 %69
    %71 = vrot.lane.b32.xlu0 %v33, 16
    %v72 = vpop.permute.xlu0 %71
    %vm73 = vcmp.lt.s32.totalorder %v38, 16
    %v74 = vsel %vm73, %v70, %v72
    %v75 = vsel %vm73, %v72, %v70
    %v76 = vsel %vm44, %v75, 0.0
    %v77 = vsel %vm45, %v74, 0.0
    %78 = vrot.lane.b32.xlu0 %v32, 15
    %v79 = vpop.permute.xlu0 %78
    %80 = vrot.lane.b32.xlu0 %v33, 15
    %v81 = vpop.permute.xlu0 %80
    %vm82 = vcmp.lt.s32.totalorder %v38, 15
    %v83 = vsel %vm82, %v79, %v81
    %v84 = vsel %vm82, %v81, %v79
    %v85 = vsel %vm52, %v84, 0.0
    %v86 = vsel %vm53, %v83, 0.0
    %87 = vrot.lane.b32.xlu0 %v32, 1
    %v88 = vpop.permute.xlu0 %87
    %89 = vrot.lane.b32.xlu0 %v33, 1
    %v90 = vpop.permute.xlu0 %89
    %vm91 = vcmp.lt.s32.totalorder %v38, 1
    %v92 = vsel %vm91, %v88, %v90
    %v93 = vsel %vm91, %v90, %v88
    %v94 = vsel %vm46, %v93, 0.0
    %v95 = vsel %vm47, %v92, 0.0
    %96 = vrot.lane.b32.xlu0 %v32, 127
    %v97 = vpop.permute.xlu0 %96
    %98 = vrot.lane.b32.xlu0 %v33, 127
    %v99 = vpop.permute.xlu0 %98
    %vm100 = vcmp.lt.s32.totalorder %v38, 127
    %v101 = vsel %vm100, %v97, %v99
    %v102 = vsel %vm100, %v99, %v97
    %v103 = vsel %vm50, %v101, 0.0
    %v104 = vsel %vm51, %v102, 0.0
    %105 = vrot.lane.b32.xlu0 %v32, 113
    %v106 = vpop.permute.xlu0 %105
    %107 = vrot.lane.b32.xlu0 %v33, 113
    %v108 = vpop.permute.xlu0 %107
    %vm109 = vcmp.lt.s32.totalorder %v38, 113
    %v110 = vsel %vm109, %v106, %v108
    %v111 = vsel %vm109, %v108, %v106
    %v112 = vsel %vm56, %v110, 0.0
    %v113 = vsel %vm57, %v111, 0.0
    %114 = vrot.lane.b32.xlu0 %v32, 112
    %v115 = vpop.permute.xlu0 %114
    %116 = vrot.lane.b32.xlu0 %v33, 112
    %v117 = vpop.permute.xlu0 %116
    %vm118 = vcmp.lt.s32.totalorder %v38, 112
    %v119 = vsel %vm118, %v115, %v117
    %v120 = vsel %vm118, %v117, %v115
    %v121 = vsel %vm54, %v119, 0.0
    %v122 = vsel %vm55, %v120, 0.0
    %123 = vrot.lane.b32.xlu0 %v32, 111
    %v124 = vpop.permute.xlu0 %123
    %125 = vrot.lane.b32.xlu0 %v33, 111
    %v126 = vpop.permute.xlu0 %125
    %vm127 = vcmp.lt.s32.totalorder %v38, 111
    %v128 = vsel %vm127, %v124, %v126
    %v129 = vsel %vm127, %v126, %v124
    %v130 = vsel %vm58, %v128, 0.0
    %v131 = vsel %vm59, %v129, 0.0
    %vm132 = vcmask 588800
    %v134 = vsel %vm132, %v34, 0
    %136 = vmatpush.msra.mxu0 0.0
    %137 = vmatpush.msra.mxu0 0.0
    %138 = vmatpush.msra.mxu0 0.0
    %139 = vmatpush.msra.mxu0 0.0
    %140 = vmatpush.msra.mxu0 0.0
    %141 = vmatpush.msra.mxu0 0.0
    %142 = vmatpush.msra.mxu0 0.0
    %v143 = vand.u32 %v130, 4294901760
    %144 = vmatpush.msra.mxu0 %v143
    %v145 = vand.u32 %v121, 4294901760
    %146 = vmatpush.msra.mxu0 %v145
    %v147 = vand.u32 %v112, 4294901760
    %148 = vmatpush.msra.mxu0 %v147
    %v149 = vand.u32 %v103, 4294901760
    %150 = vmatpush.msra.mxu0 %v149
    %v151 = vand.u32 %v32, 4294901760
    %152 = vmatpush.msra.mxu0 %v151
    %v153 = vand.u32 %v94, 4294901760
    %154 = vmatpush.msra.mxu0 %v153
    %v155 = vand.u32 %v85, 4294901760
    %156 = vmatpush.msra.mxu0 %v155
    %v157 = vand.u32 %v76, 4294901760
    %158 = vmatpush.msra.mxu0 %v157
    %v159 = vand.u32 %v67, 4294901760
    %160 = vmatpush.msra.mxu0 %v159
    %v161 = vand.u32 %v134, 4294901760
    %v162 = vsub.f32 %v134, %v161
    %v163 = vand.u32 %v162, 4294901760
    %v164 = vsub.f32 %v162, %v163
    %v165 = vand.u32 %v164, 4294901760
    %166 = vmatmul.f32.gmra.mxu0 %v165
    %v167 = vpop.f32.mrf.mxu0
    %v168 = vadd.f32 0.0, %v167
    %169 = vdwg.mxu0
    %170 = vmatpush.msra.mxu0 0.0
    %171 = vmatpush.msra.mxu0 0.0
    %172 = vmatpush.msra.mxu0 0.0
    %173 = vmatpush.msra.mxu0 0.0
    %174 = vmatpush.msra.mxu0 0.0
    %175 = vmatpush.msra.mxu0 0.0
    %176 = vmatpush.msra.mxu0 0.0
    %v177 = vand.u32 %v130, 4294901760
    %v178 = vsub.f32 %v130, %v177
    %v179 = vand.u32 %v178, 4294901760
    %v180 = vsub.f32 %v178, %v179
    %v181 = vand.u32 %v180, 4294901760
    %182 = vmatpush.msra.mxu0 %v181
    %v183 = vand.u32 %v121, 4294901760
    %v184 = vsub.f32 %v121, %v183
    %v185 = vand.u32 %v184, 4294901760
    %v186 = vsub.f32 %v184, %v185
    %v187 = vand.u32 %v186, 4294901760
    %188 = vmatpush.msra.mxu0 %v187
    %v189 = vand.u32 %v112, 4294901760
    %v190 = vsub.f32 %v112, %v189
    %v191 = vand.u32 %v190, 4294901760
    %v192 = vsub.f32 %v190, %v191
    %v193 = vand.u32 %v192, 4294901760
    %194 = vmatpush.msra.mxu0 %v193
    %v195 = vand.u32 %v103, 4294901760
    %v196 = vsub.f32 %v103, %v195
    %v197 = vand.u32 %v196, 4294901760
    %v198 = vsub.f32 %v196, %v197
    %v199 = vand.u32 %v198, 4294901760
    %200 = vmatpush.msra.mxu0 %v199
    %v201 = vand.u32 %v32, 4294901760
    %v202 = vsub.f32 %v32, %v201
    %v203 = vand.u32 %v202, 4294901760
    %v204 = vsub.f32 %v202, %v203
    %v205 = vand.u32 %v204, 4294901760
    %206 = vmatpush.msra.mxu0 %v205
    %v207 = vand.u32 %v94, 4294901760
    %v208 = vsub.f32 %v94, %v207
    %v209 = vand.u32 %v208, 4294901760
    %v210 = vsub.f32 %v208, %v209
    %v211 = vand.u32 %v210, 4294901760
    %212 = vmatpush.msra.mxu0 %v211
    %v213 = vand.u32 %v85, 4294901760
    %v214 = vsub.f32 %v85, %v213
    %v215 = vand.u32 %v214, 4294901760
    %v216 = vsub.f32 %v214, %v215
    %v217 = vand.u32 %v216, 4294901760
    %218 = vmatpush.msra.mxu0 %v217
    %v219 = vand.u32 %v76, 4294901760
    %v220 = vsub.f32 %v76, %v219
    %v221 = vand.u32 %v220, 4294901760
    %v222 = vsub.f32 %v220, %v221
    %v223 = vand.u32 %v222, 4294901760
    %224 = vmatpush.msra.mxu0 %v223
    %v225 = vand.u32 %v67, 4294901760
    %v226 = vsub.f32 %v67, %v225
    %v227 = vand.u32 %v226, 4294901760
    %v228 = vsub.f32 %v226, %v227
    %v229 = vand.u32 %v228, 4294901760
    %230 = vmatpush.msra.mxu0 %v229
    %v231 = vand.u32 %v134, 4294901760
    %232 = vmatmul.f32.gmra.mxu0 %v231
    %v233 = vpop.f32.mrf.mxu0
    %v234 = vadd.f32 %v168, %v233
    %235 = vdwg.mxu0
    %236 = vmatpush.msra.mxu0 0.0
    %237 = vmatpush.msra.mxu0 0.0
    %238 = vmatpush.msra.mxu0 0.0
    %239 = vmatpush.msra.mxu0 0.0
    %240 = vmatpush.msra.mxu0 0.0
    %241 = vmatpush.msra.mxu0 0.0
    %242 = vmatpush.msra.mxu0 0.0
    %v243 = vand.u32 %v130, 4294901760
    %v244 = vsub.f32 %v130, %v243
    %245 = vmatpush.msra.mxu0 %v244
    %v246 = vand.u32 %v121, 4294901760
    %v247 = vsub.f32 %v121, %v246
    %248 = vmatpush.msra.mxu0 %v247
    %v249 = vand.u32 %v112, 4294901760
    %v250 = vsub.f32 %v112, %v249
    %251 = vmatpush.msra.mxu0 %v250
    %v252 = vand.u32 %v103, 4294901760
    %v253 = vsub.f32 %v103, %v252
    %254 = vmatpush.msra.mxu0 %v253
    %v255 = vand.u32 %v32, 4294901760
    %v256 = vsub.f32 %v32, %v255
    %257 = vmatpush.msra.mxu0 %v256
    %v258 = vand.u32 %v94, 4294901760
    %v259 = vsub.f32 %v94, %v258
    %260 = vmatpush.msra.mxu0 %v259
    %v261 = vand.u32 %v85, 4294901760
    %v262 = vsub.f32 %v85, %v261
    %263 = vmatpush.msra.mxu0 %v262
    %v264 = vand.u32 %v76, 4294901760
    %v265 = vsub.f32 %v76, %v264
    %266 = vmatpush.msra.mxu0 %v265
    %v267 = vand.u32 %v67, 4294901760
    %v268 = vsub.f32 %v67, %v267
    %269 = vmatpush.msra.mxu0 %v268
    %v270 = vand.u32 %v134, 4294901760
    %v271 = vsub.f32 %v134, %v270
    %272 = vmatmul.f32.gmra.mxu0 %v271
    %v273 = vpop.f32.mrf.mxu0
    %v274 = vadd.f32 %v234, %v273
    %275 = vdwg.mxu0
    %276 = vmatpush.msra.mxu0 0.0
    %277 = vmatpush.msra.mxu0 0.0
    %278 = vmatpush.msra.mxu0 0.0
    %279 = vmatpush.msra.mxu0 0.0
    %280 = vmatpush.msra.mxu0 0.0
    %281 = vmatpush.msra.mxu0 0.0
    %282 = vmatpush.msra.mxu0 0.0
    %v283 = vand.u32 %v130, 4294901760
    %284 = vmatpush.msra.mxu0 %v283
    %v285 = vand.u32 %v121, 4294901760
    %286 = vmatpush.msra.mxu0 %v285
    %v287 = vand.u32 %v112, 4294901760
    %288 = vmatpush.msra.mxu0 %v287
    %v289 = vand.u32 %v103, 4294901760
    %290 = vmatpush.msra.mxu0 %v289
    %v291 = vand.u32 %v32, 4294901760
    %292 = vmatpush.msra.mxu0 %v291
    %v293 = vand.u32 %v94, 4294901760
    %294 = vmatpush.msra.mxu0 %v293
    %v295 = vand.u32 %v85, 4294901760
    %296 = vmatpush.msra.mxu0 %v295
    %v297 = vand.u32 %v76, 4294901760
    %298 = vmatpush.msra.mxu0 %v297
    %v299 = vand.u32 %v67, 4294901760
    %300 = vmatpush.msra.mxu0 %v299
    %v301 = vand.u32 %v134, 4294901760
    %v302 = vsub.f32 %v134, %v301
    %v303 = vand.u32 %v302, 4294901760
    %304 = vmatmul.f32.gmra.mxu0 %v303
    %v305 = vpop.f32.mrf.mxu0
    %v306 = vadd.f32 %v274, %v305
    %307 = vdwg.mxu0
    %308 = vmatpush.msra.mxu0 0.0
    %309 = vmatpush.msra.mxu0 0.0
    %310 = vmatpush.msra.mxu0 0.0
    %311 = vmatpush.msra.mxu0 0.0
    %312 = vmatpush.msra.mxu0 0.0
    %313 = vmatpush.msra.mxu0 0.0
    %314 = vmatpush.msra.mxu0 0.0
    %v315 = vand.u32 %v130, 4294901760
    %v316 = vsub.f32 %v130, %v315
    %v317 = vand.u32 %v316, 4294901760
    %318 = vmatpush.msra.mxu0 %v317
    %v319 = vand.u32 %v121, 4294901760
    %v320 = vsub.f32 %v121, %v319
    %v321 = vand.u32 %v320, 4294901760
    %322 = vmatpush.msra.mxu0 %v321
    %v323 = vand.u32 %v112, 4294901760
    %v324 = vsub.f32 %v112, %v323
    %v325 = vand.u32 %v324, 4294901760
    %326 = vmatpush.msra.mxu0 %v325
    %v327 = vand.u32 %v103, 4294901760
    %v328 = vsub.f32 %v103, %v327
    %v329 = vand.u32 %v328, 4294901760
    %330 = vmatpush.msra.mxu0 %v329
    %v331 = vand.u32 %v32, 4294901760
    %v332 = vsub.f32 %v32, %v331
    %v333 = vand.u32 %v332, 4294901760
    %334 = vmatpush.msra.mxu0 %v333
    %v335 = vand.u32 %v94, 4294901760
    %v336 = vsub.f32 %v94, %v335
    %v337 = vand.u32 %v336, 4294901760
    %338 = vmatpush.msra.mxu0 %v337
    %v339 = vand.u32 %v85, 4294901760
    %v340 = vsub.f32 %v85, %v339
    %v341 = vand.u32 %v340, 4294901760
    %342 = vmatpush.msra.mxu0 %v341
    %v343 = vand.u32 %v76, 4294901760
    %v344 = vsub.f32 %v76, %v343
    %v345 = vand.u32 %v344, 4294901760
    %346 = vmatpush.msra.mxu0 %v345
    %v347 = vand.u32 %v67, 4294901760
    %v348 = vsub.f32 %v67, %v347
    %v349 = vand.u32 %v348, 4294901760
    %350 = vmatpush.msra.mxu0 %v349
    %v351 = vand.u32 %v134, 4294901760
    %352 = vmatmul.f32.gmra.mxu0 %v351
    %v353 = vpop.f32.mrf.mxu0
    %v354 = vadd.f32 %v306, %v353
    %355 = vdwg.mxu0
    %356 = vmatpush.msra.mxu0 0.0
    %357 = vmatpush.msra.mxu0 0.0
    %358 = vmatpush.msra.mxu0 0.0
    %359 = vmatpush.msra.mxu0 0.0
    %360 = vmatpush.msra.mxu0 0.0
    %361 = vmatpush.msra.mxu0 0.0
    %362 = vmatpush.msra.mxu0 0.0
    %v363 = vand.u32 %v130, 4294901760
    %364 = vmatpush.msra.mxu0 %v363
    %v365 = vand.u32 %v121, 4294901760
    %366 = vmatpush.msra.mxu0 %v365
    %v367 = vand.u32 %v112, 4294901760
    %368 = vmatpush.msra.mxu0 %v367
    %v369 = vand.u32 %v103, 4294901760
    %370 = vmatpush.msra.mxu0 %v369
    %v371 = vand.u32 %v32, 4294901760
    %372 = vmatpush.msra.mxu0 %v371
    %v373 = vand.u32 %v94, 4294901760
    %374 = vmatpush.msra.mxu0 %v373
    %v375 = vand.u32 %v85, 4294901760
    %376 = vmatpush.msra.mxu0 %v375
    %v377 = vand.u32 %v76, 4294901760
    %378 = vmatpush.msra.mxu0 %v377
    %v379 = vand.u32 %v67, 4294901760
    %380 = vmatpush.msra.mxu0 %v379
    %v381 = vand.u32 %v134, 4294901760
    %382 = vmatmul.f32.gmra.mxu0 %v381
    %v383 = vpop.f32.mrf.mxu0
    %v384 = vadd.f32 %v354, %v383
    %385 = vdwg.mxu0
    %386 = vmatpush.msra.mxu0 0.0
    %387 = vmatpush.msra.mxu0 0.0
    %388 = vmatpush.msra.mxu0 0.0
    %389 = vmatpush.msra.mxu0 0.0
    %390 = vmatpush.msra.mxu0 0.0
    %391 = vmatpush.msra.mxu0 0.0
    %392 = vmatpush.msra.mxu0 0.0
    %v393 = vand.u32 %v131, 4294901760
    %394 = vmatpush.msra.mxu0 %v393
    %v395 = vand.u32 %v122, 4294901760
    %396 = vmatpush.msra.mxu0 %v395
    %v397 = vand.u32 %v113, 4294901760
    %398 = vmatpush.msra.mxu0 %v397
    %v399 = vand.u32 %v104, 4294901760
    %400 = vmatpush.msra.mxu0 %v399
    %v401 = vand.u32 %v33, 4294901760
    %402 = vmatpush.msra.mxu0 %v401
    %v403 = vand.u32 %v95, 4294901760
    %404 = vmatpush.msra.mxu0 %v403
    %v405 = vand.u32 %v86, 4294901760
    %406 = vmatpush.msra.mxu0 %v405
    %v407 = vand.u32 %v77, 4294901760
    %408 = vmatpush.msra.mxu0 %v407
    %v409 = vand.u32 %v68, 4294901760
    %410 = vmatpush.msra.mxu0 %v409
    %v411 = vand.u32 %v134, 4294901760
    %v412 = vsub.f32 %v134, %v411
    %v413 = vand.u32 %v412, 4294901760
    %v414 = vsub.f32 %v412, %v413
    %v415 = vand.u32 %v414, 4294901760
    %416 = vmatmul.f32.gmra.mxu0 %v415
    %v417 = vpop.f32.mrf.mxu0
    %v418 = vadd.f32 0.0, %v417
    %419 = vdwg.mxu0
    %420 = vmatpush.msra.mxu0 0.0
    %421 = vmatpush.msra.mxu0 0.0
    %422 = vmatpush.msra.mxu0 0.0
    %423 = vmatpush.msra.mxu0 0.0
    %424 = vmatpush.msra.mxu0 0.0
    %425 = vmatpush.msra.mxu0 0.0
    %426 = vmatpush.msra.mxu0 0.0
    %v427 = vand.u32 %v131, 4294901760
    %v428 = vsub.f32 %v131, %v427
    %v429 = vand.u32 %v428, 4294901760
    %v430 = vsub.f32 %v428, %v429
    %v431 = vand.u32 %v430, 4294901760
    %432 = vmatpush.msra.mxu0 %v431
    %v433 = vand.u32 %v122, 4294901760
    %v434 = vsub.f32 %v122, %v433
    %v435 = vand.u32 %v434, 4294901760
    %v436 = vsub.f32 %v434, %v435
    %v437 = vand.u32 %v436, 4294901760
    %438 = vmatpush.msra.mxu0 %v437
    %v439 = vand.u32 %v113, 4294901760
    %v440 = vsub.f32 %v113, %v439
    %v441 = vand.u32 %v440, 4294901760
    %v442 = vsub.f32 %v440, %v441
    %v443 = vand.u32 %v442, 4294901760
    %444 = vmatpush.msra.mxu0 %v443
    %v445 = vand.u32 %v104, 4294901760
    %v446 = vsub.f32 %v104, %v445
    %v447 = vand.u32 %v446, 4294901760
    %v448 = vsub.f32 %v446, %v447
    %v449 = vand.u32 %v448, 4294901760
    %450 = vmatpush.msra.mxu0 %v449
    %v451 = vand.u32 %v33, 4294901760
    %v452 = vsub.f32 %v33, %v451
    %v453 = vand.u32 %v452, 4294901760
    %v454 = vsub.f32 %v452, %v453
    %v455 = vand.u32 %v454, 4294901760
    %456 = vmatpush.msra.mxu0 %v455
    %v457 = vand.u32 %v95, 4294901760
    %v458 = vsub.f32 %v95, %v457
    %v459 = vand.u32 %v458, 4294901760
    %v460 = vsub.f32 %v458, %v459
    %v461 = vand.u32 %v460, 4294901760
    %462 = vmatpush.msra.mxu0 %v461
    %v463 = vand.u32 %v86, 4294901760
    %v464 = vsub.f32 %v86, %v463
    %v465 = vand.u32 %v464, 4294901760
    %v466 = vsub.f32 %v464, %v465
    %v467 = vand.u32 %v466, 4294901760
    %468 = vmatpush.msra.mxu0 %v467
    %v469 = vand.u32 %v77, 4294901760
    %v470 = vsub.f32 %v77, %v469
    %v471 = vand.u32 %v470, 4294901760
    %v472 = vsub.f32 %v470, %v471
    %v473 = vand.u32 %v472, 4294901760
    %474 = vmatpush.msra.mxu0 %v473
    %v475 = vand.u32 %v68, 4294901760
    %v476 = vsub.f32 %v68, %v475
    %v477 = vand.u32 %v476, 4294901760
    %v478 = vsub.f32 %v476, %v477
    %v479 = vand.u32 %v478, 4294901760
    %480 = vmatpush.msra.mxu0 %v479
    %v481 = vand.u32 %v134, 4294901760
    %482 = vmatmul.f32.gmra.mxu0 %v481
    %v483 = vpop.f32.mrf.mxu0
    %v484 = vadd.f32 %v418, %v483
    %485 = vdwg.mxu0
    %486 = vmatpush.msra.mxu0 0.0
    %487 = vmatpush.msra.mxu0 0.0
    %488 = vmatpush.msra.mxu0 0.0
    %489 = vmatpush.msra.mxu0 0.0
    %490 = vmatpush.msra.mxu0 0.0
    %491 = vmatpush.msra.mxu0 0.0
    %492 = vmatpush.msra.mxu0 0.0
    %v493 = vand.u32 %v131, 4294901760
    %v494 = vsub.f32 %v131, %v493
    %495 = vmatpush.msra.mxu0 %v494
    %v496 = vand.u32 %v122, 4294901760
    %v497 = vsub.f32 %v122, %v496
    %498 = vmatpush.msra.mxu0 %v497
    %v499 = vand.u32 %v113, 4294901760
    %v500 = vsub.f32 %v113, %v499
    %501 = vmatpush.msra.mxu0 %v500
    %v502 = vand.u32 %v104, 4294901760
    %v503 = vsub.f32 %v104, %v502
    %504 = vmatpush.msra.mxu0 %v503
    %v505 = vand.u32 %v33, 4294901760
    %v506 = vsub.f32 %v33, %v505
    %507 = vmatpush.msra.mxu0 %v506
    %v508 = vand.u32 %v95, 4294901760
    %v509 = vsub.f32 %v95, %v508
    %510 = vmatpush.msra.mxu0 %v509
    %v511 = vand.u32 %v86, 4294901760
    %v512 = vsub.f32 %v86, %v511
    %513 = vmatpush.msra.mxu0 %v512
    %v514 = vand.u32 %v77, 4294901760
    %v515 = vsub.f32 %v77, %v514
    %516 = vmatpush.msra.mxu0 %v515
    %v517 = vand.u32 %v68, 4294901760
    %v518 = vsub.f32 %v68, %v517
    %519 = vmatpush.msra.mxu0 %v518
    %v520 = vand.u32 %v134, 4294901760
    %v521 = vsub.f32 %v134, %v520
    %522 = vmatmul.f32.gmra.mxu0 %v521
    %v523 = vpop.f32.mrf.mxu0
    %v524 = vadd.f32 %v484, %v523
    %525 = vdwg.mxu0
    %526 = vmatpush.msra.mxu0 0.0
    %527 = vmatpush.msra.mxu0 0.0
    %528 = vmatpush.msra.mxu0 0.0
    %529 = vmatpush.msra.mxu0 0.0
    %530 = vmatpush.msra.mxu0 0.0
    %531 = vmatpush.msra.mxu0 0.0
    %532 = vmatpush.msra.mxu0 0.0
    %v533 = vand.u32 %v131, 4294901760
    %534 = vmatpush.msra.mxu0 %v533
    %v535 = vand.u32 %v122, 4294901760
    %536 = vmatpush.msra.mxu0 %v535
    %v537 = vand.u32 %v113, 4294901760
    %538 = vmatpush.msra.mxu0 %v537
    %v539 = vand.u32 %v104, 4294901760
    %540 = vmatpush.msra.mxu0 %v539
    %v541 = vand.u32 %v33, 4294901760
    %542 = vmatpush.msra.mxu0 %v541
    %v543 = vand.u32 %v95, 4294901760
    %544 = vmatpush.msra.mxu0 %v543
    %v545 = vand.u32 %v86, 4294901760
    %546 = vmatpush.msra.mxu0 %v545
    %v547 = vand.u32 %v77, 4294901760
    %548 = vmatpush.msra.mxu0 %v547
    %v549 = vand.u32 %v68, 4294901760
    %550 = vmatpush.msra.mxu0 %v549
    %v551 = vand.u32 %v134, 4294901760
    %v552 = vsub.f32 %v134, %v551
    %v553 = vand.u32 %v552, 4294901760
    %554 = vmatmul.f32.gmra.mxu0 %v553
    %v555 = vpop.f32.mrf.mxu0
    %v556 = vadd.f32 %v524, %v555
    %557 = vdwg.mxu0
    %558 = vmatpush.msra.mxu0 0.0
    %559 = vmatpush.msra.mxu0 0.0
    %560 = vmatpush.msra.mxu0 0.0
    %561 = vmatpush.msra.mxu0 0.0
    %562 = vmatpush.msra.mxu0 0.0
    %563 = vmatpush.msra.mxu0 0.0
    %564 = vmatpush.msra.mxu0 0.0
    %v565 = vand.u32 %v131, 4294901760
    %v566 = vsub.f32 %v131, %v565
    %v567 = vand.u32 %v566, 4294901760
    %568 = vmatpush.msra.mxu0 %v567
    %v569 = vand.u32 %v122, 4294901760
    %v570 = vsub.f32 %v122, %v569
    %v571 = vand.u32 %v570, 4294901760
    %572 = vmatpush.msra.mxu0 %v571
    %v573 = vand.u32 %v113, 4294901760
    %v574 = vsub.f32 %v113, %v573
    %v575 = vand.u32 %v574, 4294901760
    %576 = vmatpush.msra.mxu0 %v575
    %v577 = vand.u32 %v104, 4294901760
    %v578 = vsub.f32 %v104, %v577
    %v579 = vand.u32 %v578, 4294901760
    %580 = vmatpush.msra.mxu0 %v579
    %v581 = vand.u32 %v33, 4294901760
    %v582 = vsub.f32 %v33, %v581
    %v583 = vand.u32 %v582, 4294901760
    %584 = vmatpush.msra.mxu0 %v583
    %v585 = vand.u32 %v95, 4294901760
    %v586 = vsub.f32 %v95, %v585
    %v587 = vand.u32 %v586, 4294901760
    %588 = vmatpush.msra.mxu0 %v587
    %v589 = vand.u32 %v86, 4294901760
    %v590 = vsub.f32 %v86, %v589
    %v591 = vand.u32 %v590, 4294901760
    %592 = vmatpush.msra.mxu0 %v591
    %v593 = vand.u32 %v77, 4294901760
    %v594 = vsub.f32 %v77, %v593
    %v595 = vand.u32 %v594, 4294901760
    %596 = vmatpush.msra.mxu0 %v595
    %v597 = vand.u32 %v68, 4294901760
    %v598 = vsub.f32 %v68, %v597
    %v599 = vand.u32 %v598, 4294901760
    %600 = vmatpush.msra.mxu0 %v599
    %v601 = vand.u32 %v134, 4294901760
    %602 = vmatmul.f32.gmra.mxu0 %v601
    %v603 = vpop.f32.mrf.mxu0
    %v604 = vadd.f32 %v556, %v603
    %605 = vdwg.mxu0
    %606 = vmatpush.msra.mxu0 0.0
    %607 = vmatpush.msra.mxu0 0.0
    %608 = vmatpush.msra.mxu0 0.0
    %609 = vmatpush.msra.mxu0 0.0
    %610 = vmatpush.msra.mxu0 0.0
    %611 = vmatpush.msra.mxu0 0.0
    %612 = vmatpush.msra.mxu0 0.0
    %v613 = vand.u32 %v131, 4294901760
    %614 = vmatpush.msra.mxu0 %v613
    %v615 = vand.u32 %v122, 4294901760
    %616 = vmatpush.msra.mxu0 %v615
    %v617 = vand.u32 %v113, 4294901760
    %618 = vmatpush.msra.mxu0 %v617
    %v619 = vand.u32 %v104, 4294901760
    %620 = vmatpush.msra.mxu0 %v619
    %v621 = vand.u32 %v33, 4294901760
    %622 = vmatpush.msra.mxu0 %v621
    %v623 = vand.u32 %v95, 4294901760
    %624 = vmatpush.msra.mxu0 %v623
    %v625 = vand.u32 %v86, 4294901760
    %626 = vmatpush.msra.mxu0 %v625
    %v627 = vand.u32 %v77, 4294901760
    %628 = vmatpush.msra.mxu0 %v627
    %v629 = vand.u32 %v68, 4294901760
    %630 = vmatpush.msra.mxu0 %v629
    %v631 = vand.u32 %v134, 4294901760
    %632 = vmatmul.f32.gmra.mxu0 %v631
    %v633 = vpop.f32.mrf.mxu0
    %v634 = vadd.f32 %v604, %v633
    %635 = vdwg.mxu0
    %v636 = vadd.f32 %v384, %v634
    %637 = vadd.xlane.f32.xlu0 %v636
    %v638 = vpop.xlane.xlu0 %637
    %v639 = vrot.slane %v638, 4
    %v640 = vadd.f32 %v638, %v639
    %v641 = vmul.f32 %v640, 0.001953125
    %643 = vset.pattern.permute.xlu0 0
    %644 = vperm.xlu0 %643, %v641
    %v645 = vpop.permute.xlu0 %644
    %v647 = vsub.f32 %v384, %v645
    %v648 = vsub.f32 %v634, %v645
    %v649 = vmul.f32 %v647, %v647
    %v650 = vmul.f32 %v648, %v648
    %v651 = vadd.f32 %v649, %v650
    %652 = vadd.xlane.f32.xlu0 %v651
    %v653 = vpop.xlane.xlu0 %652
    %v654 = vrot.slane %v653, 4
    %v655 = vadd.f32 %v653, %v654
    %v656 = vmul.f32 %v655, 0.001953125
    %v657 = vadd.f32 %v656, 1e-05
    %v658 = vrsqrt.pop %v657
    %v659 = vmul.f32 %v658, %v657
    %v660 = vmul.f32 %v659, %v658
    %v661 = vmul.f32 0.5, %v660
    %v662 = vsub.f32 1.5, %v661
    %v663 = vmul.f32 %v658, %v662
    %vm664 = vweird.f32 %v657
    %vm665 = vweird.f32 %v658
    %vm666 = vmor %vm664, %vm665
    %v667 = vsel %vm666, %v658, %v663
    %v668 = vmul.f32 %v667, %v35
    %670 = vset.pattern.permute.xlu0 0
    %671 = vperm.xlu0 %670, %v668
    %v672 = vpop.permute.xlu0 %671
    %v674 = vmul.f32 %v647, %v672
    %v675 = vmul.f32 %v648, %v672
    %677 = vset.pattern.permute.xlu0 0
    %678 = vperm.xlu0 %677, %v36
    %v679 = vpop.permute.xlu0 %678
    %v681 = vadd.f32 %v674, %v679
    %v682 = vadd.f32 %v675, %v679
    %v683 = vmax.f32 %v681, 0.0
    %v684 = vmax.f32 %v682, 0.0
    %685 = vrot.lane.b32.xlu0 %v683, 17
    %v686 = vpop.permute.xlu0 %685
    %687 = vrot.lane.b32.xlu0 %v684, 17
    %v688 = vpop.permute.xlu0 %687
    %v689 = vsel %vm64, %v686, %v688
    %v690 = vsel %vm64, %v688, %v686
    %v691 = vsel %vm48, %v690, 0.0
    %v692 = vsel %vm49, %v689, 0.0
    %693 = vrot.lane.b32.xlu0 %v683, 16
    %v694 = vpop.permute.xlu0 %693
    %695 = vrot.lane.b32.xlu0 %v684, 16
    %v696 = vpop.permute.xlu0 %695
    %v697 = vsel %vm73, %v694, %v696
    %v698 = vsel %vm73, %v696, %v694
    %v699 = vsel %vm44, %v698, 0.0
    %v700 = vsel %vm45, %v697, 0.0
    %701 = vrot.lane.b32.xlu0 %v683, 15
    %v702 = vpop.permute.xlu0 %701
    %703 = vrot.lane.b32.xlu0 %v684, 15
    %v704 = vpop.permute.xlu0 %703
    %v705 = vsel %vm82, %v702, %v704
    %v706 = vsel %vm82, %v704, %v702
    %v707 = vsel %vm52, %v706, 0.0
    %v708 = vsel %vm53, %v705, 0.0
    %709 = vrot.lane.b32.xlu0 %v683, 1
    %v710 = vpop.permute.xlu0 %709
    %711 = vrot.lane.b32.xlu0 %v684, 1
    %v712 = vpop.permute.xlu0 %711
    %v713 = vsel %vm91, %v710, %v712
    %v714 = vsel %vm91, %v712, %v710
    %v715 = vsel %vm46, %v714, 0.0
    %v716 = vsel %vm47, %v713, 0.0
    %717 = vrot.lane.b32.xlu0 %v683, 127
    %v718 = vpop.permute.xlu0 %717
    %719 = vrot.lane.b32.xlu0 %v684, 127
    %v720 = vpop.permute.xlu0 %719
    %v721 = vsel %vm100, %v718, %v720
    %v722 = vsel %vm100, %v720, %v718
    %v723 = vsel %vm50, %v721, 0.0
    %v724 = vsel %vm51, %v722, 0.0
    %725 = vrot.lane.b32.xlu0 %v683, 113
    %v726 = vpop.permute.xlu0 %725
    %727 = vrot.lane.b32.xlu0 %v684, 113
    %v728 = vpop.permute.xlu0 %727
    %v729 = vsel %vm109, %v726, %v728
    %v730 = vsel %vm109, %v728, %v726
    %v731 = vsel %vm56, %v729, 0.0
    %v732 = vsel %vm57, %v730, 0.0
    %733 = vrot.lane.b32.xlu0 %v683, 112
    %v734 = vpop.permute.xlu0 %733
    %735 = vrot.lane.b32.xlu0 %v684, 112
    %v736 = vpop.permute.xlu0 %735
    %v737 = vsel %vm118, %v734, %v736
    %v738 = vsel %vm118, %v736, %v734
    %v739 = vsel %vm54, %v737, 0.0
    %v740 = vsel %vm55, %v738, 0.0
    %741 = vrot.lane.b32.xlu0 %v683, 111
    %v742 = vpop.permute.xlu0 %741
    %743 = vrot.lane.b32.xlu0 %v684, 111
    %v744 = vpop.permute.xlu0 %743
    %v745 = vsel %vm127, %v742, %v744
    %v746 = vsel %vm127, %v744, %v742
    %v747 = vsel %vm58, %v745, 0.0
    %v748 = vsel %vm59, %v746, 0.0
    %749 = vmatpush.msra.mxu0 0.0
    %750 = vmatpush.msra.mxu0 0.0
    %751 = vmatpush.msra.mxu0 0.0
    %752 = vmatpush.msra.mxu0 0.0
    %753 = vmatpush.msra.mxu0 0.0
    %754 = vmatpush.msra.mxu0 0.0
    %755 = vmatpush.msra.mxu0 0.0
    %v756 = vand.u32 %v747, 4294901760
    %757 = vmatpush.msra.mxu0 %v756
    %v758 = vand.u32 %v739, 4294901760
    %759 = vmatpush.msra.mxu0 %v758
    %v760 = vand.u32 %v731, 4294901760
    %761 = vmatpush.msra.mxu0 %v760
    %v762 = vand.u32 %v723, 4294901760
    %763 = vmatpush.msra.mxu0 %v762
    %v764 = vand.u32 %v683, 4294901760
    %765 = vmatpush.msra.mxu0 %v764
    %v766 = vand.u32 %v715, 4294901760
    %767 = vmatpush.msra.mxu0 %v766
    %v768 = vand.u32 %v707, 4294901760
    %769 = vmatpush.msra.mxu0 %v768
    %v770 = vand.u32 %v699, 4294901760
    %771 = vmatpush.msra.mxu0 %v770
    %v772 = vand.u32 %v691, 4294901760
    %773 = vmatpush.msra.mxu0 %v772
    %v774 = vand.u32 %v134, 4294901760
    %v775 = vsub.f32 %v134, %v774
    %v776 = vand.u32 %v775, 4294901760
    %v777 = vsub.f32 %v775, %v776
    %v778 = vand.u32 %v777, 4294901760
    %779 = vmatmul.f32.gmra.mxu0 %v778
    %v780 = vpop.f32.mrf.mxu0
    %v781 = vadd.f32 0.0, %v780
    %782 = vdwg.mxu0
    %783 = vmatpush.msra.mxu0 0.0
    %784 = vmatpush.msra.mxu0 0.0
    %785 = vmatpush.msra.mxu0 0.0
    %786 = vmatpush.msra.mxu0 0.0
    %787 = vmatpush.msra.mxu0 0.0
    %788 = vmatpush.msra.mxu0 0.0
    %789 = vmatpush.msra.mxu0 0.0
    %v790 = vand.u32 %v747, 4294901760
    %v791 = vsub.f32 %v747, %v790
    %v792 = vand.u32 %v791, 4294901760
    %v793 = vsub.f32 %v791, %v792
    %v794 = vand.u32 %v793, 4294901760
    %795 = vmatpush.msra.mxu0 %v794
    %v796 = vand.u32 %v739, 4294901760
    %v797 = vsub.f32 %v739, %v796
    %v798 = vand.u32 %v797, 4294901760
    %v799 = vsub.f32 %v797, %v798
    %v800 = vand.u32 %v799, 4294901760
    %801 = vmatpush.msra.mxu0 %v800
    %v802 = vand.u32 %v731, 4294901760
    %v803 = vsub.f32 %v731, %v802
    %v804 = vand.u32 %v803, 4294901760
    %v805 = vsub.f32 %v803, %v804
    %v806 = vand.u32 %v805, 4294901760
    %807 = vmatpush.msra.mxu0 %v806
    %v808 = vand.u32 %v723, 4294901760
    %v809 = vsub.f32 %v723, %v808
    %v810 = vand.u32 %v809, 4294901760
    %v811 = vsub.f32 %v809, %v810
    %v812 = vand.u32 %v811, 4294901760
    %813 = vmatpush.msra.mxu0 %v812
    %v814 = vand.u32 %v683, 4294901760
    %v815 = vsub.f32 %v683, %v814
    %v816 = vand.u32 %v815, 4294901760
    %v817 = vsub.f32 %v815, %v816
    %v818 = vand.u32 %v817, 4294901760
    %819 = vmatpush.msra.mxu0 %v818
    %v820 = vand.u32 %v715, 4294901760
    %v821 = vsub.f32 %v715, %v820
    %v822 = vand.u32 %v821, 4294901760
    %v823 = vsub.f32 %v821, %v822
    %v824 = vand.u32 %v823, 4294901760
    %825 = vmatpush.msra.mxu0 %v824
    %v826 = vand.u32 %v707, 4294901760
    %v827 = vsub.f32 %v707, %v826
    %v828 = vand.u32 %v827, 4294901760
    %v829 = vsub.f32 %v827, %v828
    %v830 = vand.u32 %v829, 4294901760
    %831 = vmatpush.msra.mxu0 %v830
    %v832 = vand.u32 %v699, 4294901760
    %v833 = vsub.f32 %v699, %v832
    %v834 = vand.u32 %v833, 4294901760
    %v835 = vsub.f32 %v833, %v834
    %v836 = vand.u32 %v835, 4294901760
    %837 = vmatpush.msra.mxu0 %v836
    %v838 = vand.u32 %v691, 4294901760
    %v839 = vsub.f32 %v691, %v838
    %v840 = vand.u32 %v839, 4294901760
    %v841 = vsub.f32 %v839, %v840
    %v842 = vand.u32 %v841, 4294901760
    %843 = vmatpush.msra.mxu0 %v842
    %v844 = vand.u32 %v134, 4294901760
    %845 = vmatmul.f32.gmra.mxu0 %v844
    %v846 = vpop.f32.mrf.mxu0
    %v847 = vadd.f32 %v781, %v846
    %848 = vdwg.mxu0
    %849 = vmatpush.msra.mxu0 0.0
    %850 = vmatpush.msra.mxu0 0.0
    %851 = vmatpush.msra.mxu0 0.0
    %852 = vmatpush.msra.mxu0 0.0
    %853 = vmatpush.msra.mxu0 0.0
    %854 = vmatpush.msra.mxu0 0.0
    %855 = vmatpush.msra.mxu0 0.0
    %v856 = vand.u32 %v747, 4294901760
    %v857 = vsub.f32 %v747, %v856
    %858 = vmatpush.msra.mxu0 %v857
    %v859 = vand.u32 %v739, 4294901760
    %v860 = vsub.f32 %v739, %v859
    %861 = vmatpush.msra.mxu0 %v860
    %v862 = vand.u32 %v731, 4294901760
    %v863 = vsub.f32 %v731, %v862
    %864 = vmatpush.msra.mxu0 %v863
    %v865 = vand.u32 %v723, 4294901760
    %v866 = vsub.f32 %v723, %v865
    %867 = vmatpush.msra.mxu0 %v866
    %v868 = vand.u32 %v683, 4294901760
    %v869 = vsub.f32 %v683, %v868
    %870 = vmatpush.msra.mxu0 %v869
    %v871 = vand.u32 %v715, 4294901760
    %v872 = vsub.f32 %v715, %v871
    %873 = vmatpush.msra.mxu0 %v872
    %v874 = vand.u32 %v707, 4294901760
    %v875 = vsub.f32 %v707, %v874
    %876 = vmatpush.msra.mxu0 %v875
    %v877 = vand.u32 %v699, 4294901760
    %v878 = vsub.f32 %v699, %v877
    %879 = vmatpush.msra.mxu0 %v878
    %v880 = vand.u32 %v691, 4294901760
    %v881 = vsub.f32 %v691, %v880
    %882 = vmatpush.msra.mxu0 %v881
    %v883 = vand.u32 %v134, 4294901760
    %v884 = vsub.f32 %v134, %v883
    %885 = vmatmul.f32.gmra.mxu0 %v884
    %v886 = vpop.f32.mrf.mxu0
    %v887 = vadd.f32 %v847, %v886
    %888 = vdwg.mxu0
    %889 = vmatpush.msra.mxu0 0.0
    %890 = vmatpush.msra.mxu0 0.0
    %891 = vmatpush.msra.mxu0 0.0
    %892 = vmatpush.msra.mxu0 0.0
    %893 = vmatpush.msra.mxu0 0.0
    %894 = vmatpush.msra.mxu0 0.0
    %895 = vmatpush.msra.mxu0 0.0
    %v896 = vand.u32 %v747, 4294901760
    %897 = vmatpush.msra.mxu0 %v896
    %v898 = vand.u32 %v739, 4294901760
    %899 = vmatpush.msra.mxu0 %v898
    %v900 = vand.u32 %v731, 4294901760
    %901 = vmatpush.msra.mxu0 %v900
    %v902 = vand.u32 %v723, 4294901760
    %903 = vmatpush.msra.mxu0 %v902
    %v904 = vand.u32 %v683, 4294901760
    %905 = vmatpush.msra.mxu0 %v904
    %v906 = vand.u32 %v715, 4294901760
    %907 = vmatpush.msra.mxu0 %v906
    %v908 = vand.u32 %v707, 4294901760
    %909 = vmatpush.msra.mxu0 %v908
    %v910 = vand.u32 %v699, 4294901760
    %911 = vmatpush.msra.mxu0 %v910
    %v912 = vand.u32 %v691, 4294901760
    %913 = vmatpush.msra.mxu0 %v912
    %v914 = vand.u32 %v134, 4294901760
    %v915 = vsub.f32 %v134, %v914
    %v916 = vand.u32 %v915, 4294901760
    %917 = vmatmul.f32.gmra.mxu0 %v916
    %v918 = vpop.f32.mrf.mxu0
    %v919 = vadd.f32 %v887, %v918
    %920 = vdwg.mxu0
    %921 = vmatpush.msra.mxu0 0.0
    %922 = vmatpush.msra.mxu0 0.0
    %923 = vmatpush.msra.mxu0 0.0
    %924 = vmatpush.msra.mxu0 0.0
    %925 = vmatpush.msra.mxu0 0.0
    %926 = vmatpush.msra.mxu0 0.0
    %927 = vmatpush.msra.mxu0 0.0
    %v928 = vand.u32 %v747, 4294901760
    %v929 = vsub.f32 %v747, %v928
    %v930 = vand.u32 %v929, 4294901760
    %931 = vmatpush.msra.mxu0 %v930
    %v932 = vand.u32 %v739, 4294901760
    %v933 = vsub.f32 %v739, %v932
    %v934 = vand.u32 %v933, 4294901760
    %935 = vmatpush.msra.mxu0 %v934
    %v936 = vand.u32 %v731, 4294901760
    %v937 = vsub.f32 %v731, %v936
    %v938 = vand.u32 %v937, 4294901760
    %939 = vmatpush.msra.mxu0 %v938
    %v940 = vand.u32 %v723, 4294901760
    %v941 = vsub.f32 %v723, %v940
    %v942 = vand.u32 %v941, 4294901760
    %943 = vmatpush.msra.mxu0 %v942
    %v944 = vand.u32 %v683, 4294901760
    %v945 = vsub.f32 %v683, %v944
    %v946 = vand.u32 %v945, 4294901760
    %947 = vmatpush.msra.mxu0 %v946
    %v948 = vand.u32 %v715, 4294901760
    %v949 = vsub.f32 %v715, %v948
    %v950 = vand.u32 %v949, 4294901760
    %951 = vmatpush.msra.mxu0 %v950
    %v952 = vand.u32 %v707, 4294901760
    %v953 = vsub.f32 %v707, %v952
    %v954 = vand.u32 %v953, 4294901760
    %955 = vmatpush.msra.mxu0 %v954
    %v956 = vand.u32 %v699, 4294901760
    %v957 = vsub.f32 %v699, %v956
    %v958 = vand.u32 %v957, 4294901760
    %959 = vmatpush.msra.mxu0 %v958
    %v960 = vand.u32 %v691, 4294901760
    %v961 = vsub.f32 %v691, %v960
    %v962 = vand.u32 %v961, 4294901760
    %963 = vmatpush.msra.mxu0 %v962
    %v964 = vand.u32 %v134, 4294901760
    %965 = vmatmul.f32.gmra.mxu0 %v964
    %v966 = vpop.f32.mrf.mxu0
    %v967 = vadd.f32 %v919, %v966
    %968 = vdwg.mxu0
    %969 = vmatpush.msra.mxu0 0.0
    %970 = vmatpush.msra.mxu0 0.0
    %971 = vmatpush.msra.mxu0 0.0
    %972 = vmatpush.msra.mxu0 0.0
    %973 = vmatpush.msra.mxu0 0.0
    %974 = vmatpush.msra.mxu0 0.0
    %975 = vmatpush.msra.mxu0 0.0
    %v976 = vand.u32 %v747, 4294901760
    %977 = vmatpush.msra.mxu0 %v976
    %v978 = vand.u32 %v739, 4294901760
    %979 = vmatpush.msra.mxu0 %v978
    %v980 = vand.u32 %v731, 4294901760
    %981 = vmatpush.msra.mxu0 %v980
    %v982 = vand.u32 %v723, 4294901760
    %983 = vmatpush.msra.mxu0 %v982
    %v984 = vand.u32 %v683, 4294901760
    %985 = vmatpush.msra.mxu0 %v984
    %v986 = vand.u32 %v715, 4294901760
    %987 = vmatpush.msra.mxu0 %v986
    %v988 = vand.u32 %v707, 4294901760
    %989 = vmatpush.msra.mxu0 %v988
    %v990 = vand.u32 %v699, 4294901760
    %991 = vmatpush.msra.mxu0 %v990
    %v992 = vand.u32 %v691, 4294901760
    %993 = vmatpush.msra.mxu0 %v992
    %v994 = vand.u32 %v134, 4294901760
    %995 = vmatmul.f32.gmra.mxu0 %v994
    %v996 = vpop.f32.mrf.mxu0
    %v997 = vadd.f32 %v967, %v996
    %998 = vdwg.mxu0
    %999 = vmatpush.msra.mxu0 0.0
    %1000 = vmatpush.msra.mxu0 0.0
    %1001 = vmatpush.msra.mxu0 0.0
    %1002 = vmatpush.msra.mxu0 0.0
    %1003 = vmatpush.msra.mxu0 0.0
    %1004 = vmatpush.msra.mxu0 0.0
    %1005 = vmatpush.msra.mxu0 0.0
    %v1006 = vand.u32 %v748, 4294901760
    %1007 = vmatpush.msra.mxu0 %v1006
    %v1008 = vand.u32 %v740, 4294901760
    %1009 = vmatpush.msra.mxu0 %v1008
    %v1010 = vand.u32 %v732, 4294901760
    %1011 = vmatpush.msra.mxu0 %v1010
    %v1012 = vand.u32 %v724, 4294901760
    %1013 = vmatpush.msra.mxu0 %v1012
    %v1014 = vand.u32 %v684, 4294901760
    %1015 = vmatpush.msra.mxu0 %v1014
    %v1016 = vand.u32 %v716, 4294901760
    %1017 = vmatpush.msra.mxu0 %v1016
    %v1018 = vand.u32 %v708, 4294901760
    %1019 = vmatpush.msra.mxu0 %v1018
    %v1020 = vand.u32 %v700, 4294901760
    %1021 = vmatpush.msra.mxu0 %v1020
    %v1022 = vand.u32 %v692, 4294901760
    %1023 = vmatpush.msra.mxu0 %v1022
    %v1024 = vand.u32 %v134, 4294901760
    %v1025 = vsub.f32 %v134, %v1024
    %v1026 = vand.u32 %v1025, 4294901760
    %v1027 = vsub.f32 %v1025, %v1026
    %v1028 = vand.u32 %v1027, 4294901760
    %1029 = vmatmul.f32.gmra.mxu0 %v1028
    %v1030 = vpop.f32.mrf.mxu0
    %v1031 = vadd.f32 0.0, %v1030
    %1032 = vdwg.mxu0
    %1033 = vmatpush.msra.mxu0 0.0
    %1034 = vmatpush.msra.mxu0 0.0
    %1035 = vmatpush.msra.mxu0 0.0
    %1036 = vmatpush.msra.mxu0 0.0
    %1037 = vmatpush.msra.mxu0 0.0
    %1038 = vmatpush.msra.mxu0 0.0
    %1039 = vmatpush.msra.mxu0 0.0
    %v1040 = vand.u32 %v748, 4294901760
    %v1041 = vsub.f32 %v748, %v1040
    %v1042 = vand.u32 %v1041, 4294901760
    %v1043 = vsub.f32 %v1041, %v1042
    %v1044 = vand.u32 %v1043, 4294901760
    %1045 = vmatpush.msra.mxu0 %v1044
    %v1046 = vand.u32 %v740, 4294901760
    %v1047 = vsub.f32 %v740, %v1046
    %v1048 = vand.u32 %v1047, 4294901760
    %v1049 = vsub.f32 %v1047, %v1048
    %v1050 = vand.u32 %v1049, 4294901760
    %1051 = vmatpush.msra.mxu0 %v1050
    %v1052 = vand.u32 %v732, 4294901760
    %v1053 = vsub.f32 %v732, %v1052
    %v1054 = vand.u32 %v1053, 4294901760
    %v1055 = vsub.f32 %v1053, %v1054
    %v1056 = vand.u32 %v1055, 4294901760
    %1057 = vmatpush.msra.mxu0 %v1056
    %v1058 = vand.u32 %v724, 4294901760
    %v1059 = vsub.f32 %v724, %v1058
    %v1060 = vand.u32 %v1059, 4294901760
    %v1061 = vsub.f32 %v1059, %v1060
    %v1062 = vand.u32 %v1061, 4294901760
    %1063 = vmatpush.msra.mxu0 %v1062
    %v1064 = vand.u32 %v684, 4294901760
    %v1065 = vsub.f32 %v684, %v1064
    %v1066 = vand.u32 %v1065, 4294901760
    %v1067 = vsub.f32 %v1065, %v1066
    %v1068 = vand.u32 %v1067, 4294901760
    %1069 = vmatpush.msra.mxu0 %v1068
    %v1070 = vand.u32 %v716, 4294901760
    %v1071 = vsub.f32 %v716, %v1070
    %v1072 = vand.u32 %v1071, 4294901760
    %v1073 = vsub.f32 %v1071, %v1072
    %v1074 = vand.u32 %v1073, 4294901760
    %1075 = vmatpush.msra.mxu0 %v1074
    %v1076 = vand.u32 %v708, 4294901760
    %v1077 = vsub.f32 %v708, %v1076
    %v1078 = vand.u32 %v1077, 4294901760
    %v1079 = vsub.f32 %v1077, %v1078
    %v1080 = vand.u32 %v1079, 4294901760
    %1081 = vmatpush.msra.mxu0 %v1080
    %v1082 = vand.u32 %v700, 4294901760
    %v1083 = vsub.f32 %v700, %v1082
    %v1084 = vand.u32 %v1083, 4294901760
    %v1085 = vsub.f32 %v1083, %v1084
    %v1086 = vand.u32 %v1085, 4294901760
    %1087 = vmatpush.msra.mxu0 %v1086
    %v1088 = vand.u32 %v692, 4294901760
    %v1089 = vsub.f32 %v692, %v1088
    %v1090 = vand.u32 %v1089, 4294901760
    %v1091 = vsub.f32 %v1089, %v1090
    %v1092 = vand.u32 %v1091, 4294901760
    %1093 = vmatpush.msra.mxu0 %v1092
    %v1094 = vand.u32 %v134, 4294901760
    %1095 = vmatmul.f32.gmra.mxu0 %v1094
    %v1096 = vpop.f32.mrf.mxu0
    %v1097 = vadd.f32 %v1031, %v1096
    %1098 = vdwg.mxu0
    %1099 = vmatpush.msra.mxu0 0.0
    %1100 = vmatpush.msra.mxu0 0.0
    %1101 = vmatpush.msra.mxu0 0.0
    %1102 = vmatpush.msra.mxu0 0.0
    %1103 = vmatpush.msra.mxu0 0.0
    %1104 = vmatpush.msra.mxu0 0.0
    %1105 = vmatpush.msra.mxu0 0.0
    %v1106 = vand.u32 %v748, 4294901760
    %v1107 = vsub.f32 %v748, %v1106
    %1108 = vmatpush.msra.mxu0 %v1107
    %v1109 = vand.u32 %v740, 4294901760
    %v1110 = vsub.f32 %v740, %v1109
    %1111 = vmatpush.msra.mxu0 %v1110
    %v1112 = vand.u32 %v732, 4294901760
    %v1113 = vsub.f32 %v732, %v1112
    %1114 = vmatpush.msra.mxu0 %v1113
    %v1115 = vand.u32 %v724, 4294901760
    %v1116 = vsub.f32 %v724, %v1115
    %1117 = vmatpush.msra.mxu0 %v1116
    %v1118 = vand.u32 %v684, 4294901760
    %v1119 = vsub.f32 %v684, %v1118
    %1120 = vmatpush.msra.mxu0 %v1119
    %v1121 = vand.u32 %v716, 4294901760
    %v1122 = vsub.f32 %v716, %v1121
    %1123 = vmatpush.msra.mxu0 %v1122
    %v1124 = vand.u32 %v708, 4294901760
    %v1125 = vsub.f32 %v708, %v1124
    %1126 = vmatpush.msra.mxu0 %v1125
    %v1127 = vand.u32 %v700, 4294901760
    %v1128 = vsub.f32 %v700, %v1127
    %1129 = vmatpush.msra.mxu0 %v1128
    %v1130 = vand.u32 %v692, 4294901760
    %v1131 = vsub.f32 %v692, %v1130
    %1132 = vmatpush.msra.mxu0 %v1131
    %v1133 = vand.u32 %v134, 4294901760
    %v1134 = vsub.f32 %v134, %v1133
    %1135 = vmatmul.f32.gmra.mxu0 %v1134
    %v1136 = vpop.f32.mrf.mxu0
    %v1137 = vadd.f32 %v1097, %v1136
    %1138 = vdwg.mxu0
    %1139 = vmatpush.msra.mxu0 0.0
    %1140 = vmatpush.msra.mxu0 0.0
    %1141 = vmatpush.msra.mxu0 0.0
    %1142 = vmatpush.msra.mxu0 0.0
    %1143 = vmatpush.msra.mxu0 0.0
    %1144 = vmatpush.msra.mxu0 0.0
    %1145 = vmatpush.msra.mxu0 0.0
    %v1146 = vand.u32 %v748, 4294901760
    %1147 = vmatpush.msra.mxu0 %v1146
    %v1148 = vand.u32 %v740, 4294901760
    %1149 = vmatpush.msra.mxu0 %v1148
    %v1150 = vand.u32 %v732, 4294901760
    %1151 = vmatpush.msra.mxu0 %v1150
    %v1152 = vand.u32 %v724, 4294901760
    %1153 = vmatpush.msra.mxu0 %v1152
    %v1154 = vand.u32 %v684, 4294901760
    %1155 = vmatpush.msra.mxu0 %v1154
    %v1156 = vand.u32 %v716, 4294901760
    %1157 = vmatpush.msra.mxu0 %v1156
    %v1158 = vand.u32 %v708, 4294901760
    %1159 = vmatpush.msra.mxu0 %v1158
    %v1160 = vand.u32 %v700, 4294901760
    %1161 = vmatpush.msra.mxu0 %v1160
    %v1162 = vand.u32 %v692, 4294901760
    %1163 = vmatpush.msra.mxu0 %v1162
    %v1164 = vand.u32 %v134, 4294901760
    %v1165 = vsub.f32 %v134, %v1164
    %v1166 = vand.u32 %v1165, 4294901760
    %1167 = vmatmul.f32.gmra.mxu0 %v1166
    %v1168 = vpop.f32.mrf.mxu0
    %v1169 = vadd.f32 %v1137, %v1168
    %1170 = vdwg.mxu0
    %1171 = vmatpush.msra.mxu0 0.0
    %1172 = vmatpush.msra.mxu0 0.0
    %1173 = vmatpush.msra.mxu0 0.0
    %1174 = vmatpush.msra.mxu0 0.0
    %1175 = vmatpush.msra.mxu0 0.0
    %1176 = vmatpush.msra.mxu0 0.0
    %1177 = vmatpush.msra.mxu0 0.0
    %v1178 = vand.u32 %v748, 4294901760
    %v1179 = vsub.f32 %v748, %v1178
    %v1180 = vand.u32 %v1179, 4294901760
    %1181 = vmatpush.msra.mxu0 %v1180
    %v1182 = vand.u32 %v740, 4294901760
    %v1183 = vsub.f32 %v740, %v1182
    %v1184 = vand.u32 %v1183, 4294901760
    %1185 = vmatpush.msra.mxu0 %v1184
    %v1186 = vand.u32 %v732, 4294901760
    %v1187 = vsub.f32 %v732, %v1186
    %v1188 = vand.u32 %v1187, 4294901760
    %1189 = vmatpush.msra.mxu0 %v1188
    %v1190 = vand.u32 %v724, 4294901760
    %v1191 = vsub.f32 %v724, %v1190
    %v1192 = vand.u32 %v1191, 4294901760
    %1193 = vmatpush.msra.mxu0 %v1192
    %v1194 = vand.u32 %v684, 4294901760
    %v1195 = vsub.f32 %v684, %v1194
    %v1196 = vand.u32 %v1195, 4294901760
    %1197 = vmatpush.msra.mxu0 %v1196
    %v1198 = vand.u32 %v716, 4294901760
    %v1199 = vsub.f32 %v716, %v1198
    %v1200 = vand.u32 %v1199, 4294901760
    %1201 = vmatpush.msra.mxu0 %v1200
    %v1202 = vand.u32 %v708, 4294901760
    %v1203 = vsub.f32 %v708, %v1202
    %v1204 = vand.u32 %v1203, 4294901760
    %1205 = vmatpush.msra.mxu0 %v1204
    %v1206 = vand.u32 %v700, 4294901760
    %v1207 = vsub.f32 %v700, %v1206
    %v1208 = vand.u32 %v1207, 4294901760
    %1209 = vmatpush.msra.mxu0 %v1208
    %v1210 = vand.u32 %v692, 4294901760
    %v1211 = vsub.f32 %v692, %v1210
    %v1212 = vand.u32 %v1211, 4294901760
    %1213 = vmatpush.msra.mxu0 %v1212
    %v1214 = vand.u32 %v134, 4294901760
    %1215 = vmatmul.f32.gmra.mxu0 %v1214
    %v1216 = vpop.f32.mrf.mxu0
    %v1217 = vadd.f32 %v1169, %v1216
    %1218 = vdwg.mxu0
    %1219 = vmatpush.msra.mxu0 0.0
    %1220 = vmatpush.msra.mxu0 0.0
    %1221 = vmatpush.msra.mxu0 0.0
    %1222 = vmatpush.msra.mxu0 0.0
    %1223 = vmatpush.msra.mxu0 0.0
    %1224 = vmatpush.msra.mxu0 0.0
    %1225 = vmatpush.msra.mxu0 0.0
    %v1226 = vand.u32 %v748, 4294901760
    %1227 = vmatpush.msra.mxu0 %v1226
    %v1228 = vand.u32 %v740, 4294901760
    %1229 = vmatpush.msra.mxu0 %v1228
    %v1230 = vand.u32 %v732, 4294901760
    %1231 = vmatpush.msra.mxu0 %v1230
    %v1232 = vand.u32 %v724, 4294901760
    %1233 = vmatpush.msra.mxu0 %v1232
    %v1234 = vand.u32 %v684, 4294901760
    %1235 = vmatpush.msra.mxu0 %v1234
    %v1236 = vand.u32 %v716, 4294901760
    %1237 = vmatpush.msra.mxu0 %v1236
    %v1238 = vand.u32 %v708, 4294901760
    %1239 = vmatpush.msra.mxu0 %v1238
    %v1240 = vand.u32 %v700, 4294901760
    %1241 = vmatpush.msra.mxu0 %v1240
    %v1242 = vand.u32 %v692, 4294901760
    %1243 = vmatpush.msra.mxu0 %v1242
    %v1244 = vand.u32 %v134, 4294901760
    %1245 = vmatmul.f32.gmra.mxu0 %v1244
    %v1246 = vpop.f32.mrf.mxu0
    %v1247 = vadd.f32 %v1217, %v1246
    %1248 = vdwg.mxu0
    %v1249 = vadd.f32 %v997, %v1247
    %1250 = vadd.xlane.f32.xlu0 %v1249
    %v1251 = vpop.xlane.xlu0 %1250
    %v1252 = vrot.slane %v1251, 4
    %v1253 = vadd.f32 %v1251, %v1252
    %v1254 = vmul.f32 %v1253, 0.001953125
    %1256 = vset.pattern.permute.xlu0 0
    %1257 = vperm.xlu0 %1256, %v1254
    %v1258 = vpop.permute.xlu0 %1257
    %v1260 = vsub.f32 %v997, %v1258
    %v1261 = vsub.f32 %v1247, %v1258
    %v1262 = vmul.f32 %v1260, %v1260
    %v1263 = vmul.f32 %v1261, %v1261
    %v1264 = vadd.f32 %v1262, %v1263
    %1265 = vadd.xlane.f32.xlu0 %v1264
    %v1266 = vpop.xlane.xlu0 %1265
    %v1267 = vrot.slane %v1266, 4
    %v1268 = vadd.f32 %v1266, %v1267
    %v1269 = vmul.f32 %v1268, 0.001953125
    %v1270 = vadd.f32 %v1269, 1e-05
    %v1271 = vrsqrt.pop %v1270
    %v1272 = vmul.f32 %v1271, %v1270
    %v1273 = vmul.f32 %v1272, %v1271
    %v1274 = vmul.f32 0.5, %v1273
    %v1275 = vsub.f32 1.5, %v1274
    %v1276 = vmul.f32 %v1271, %v1275
    %vm1277 = vweird.f32 %v1270
    %vm1278 = vweird.f32 %v1271
    %vm1279 = vmor %vm1277, %vm1278
    %v1280 = vsel %vm1279, %v1271, %v1276
    %v1281 = vmul.f32 %v1280, %v35
    %1283 = vset.pattern.permute.xlu0 0
    %1284 = vperm.xlu0 %1283, %v1281
    %v1285 = vpop.permute.xlu0 %1284
    %v1287 = vmul.f32 %v1260, %v1285
    %v1288 = vmul.f32 %v1261, %v1285
    %v1289 = vadd.f32 %v1287, %v679
    %v1290 = vadd.f32 %v1288, %v679
    %v1291 = vmax.f32 %v1289, 0.0
    %v1292 = vmax.f32 %v1290, 0.0
    %v1293 = vadd.f32 %v1291, %v32
    %v1294 = vadd.f32 %v1292, %v33
    %v1295 = vmax.f32 %v1293, 0.0
    %v1296 = vmax.f32 %v1294, 0.0
    %1297 = vst [vmem:[#allocation5] sm:$0xff] %v1295
    %1298 = vst [vmem:[#allocation5 + $0x8] sm:$0xff] %v1296
    // Predicated region
    $region22: #{tpu_custom_call.1} parent=1 // pred_check
      _
    $region23: #{tpu_custom_call.1} parent=1 // pred_check_branch
      %1300 = sbr.rel (0) target = $region25
    $region24: #{tpu_custom_call.1} parent=1 // pred_region
      %1302 = vsyncadd [#allocation4], 0
      %s1304 = sshll.u32 [#allocation5], 4
      %s1305 = int_to_ptr.vmem [resolvable:$true] %s1304
      %s1306 = sshll.u32 %s4, 4
      %s1307 = int_to_ptr.hbm [resolvable:$true] %s1306
      %1309 = dma.vmem_to_hbm [thread:$0]  %s1305, 256, %s1307, [#allocation4]
    $region25: #{tpu_custom_call.1} parent=1 // pred_fallthru
      _
    // Predicated region
    $region26: #{tpu_custom_call.1} parent=1 // pred_check
      _
    $region27: #{tpu_custom_call.1} parent=1 // pred_check_branch
      %1311 = sbr.rel (0) target = $region29
    $region28: #{tpu_custom_call.1} parent=1 // pred_region
      %1313 = dma.done [#allocation4], 256
    $region29: #{tpu_custom_call.1} parent=1 // pred_fallthru
      _
    %1314 = vsyncpa [#allocation3], 1
    %1315 = vsyncpa [#allocation4], 1

</llo_original>
